<compile_context>
chip_gen: v6e
topology: v6e:2x2x1
jax: 0.10.0
libtpu: 0.0.40
codegen_flags: <defaults>
</compile_context>

<pallas_src>
import numpy as np
import jax
import jax.numpy as jnp
from jax.experimental import pallas as pl
from jax.experimental.pallas import tpu as pltpu

# ----------------------------- module constants (small synthetic config) ----
SR = 16000
N_FFT = 128          # whisper uses 400; kept small & consistent semantics
HOP_LENGTH = 32      # whisper uses 160
N_MELS = 16          # whisper uses 80
PADDING = 0


# ----------------------------- deterministic parameter construction ---------
def _hz_to_mel(f):
    f = np.asarray(f, dtype=np.float64)
    f_sp = 200.0 / 3
    mels = f / f_sp
    min_log_hz = 1000.0
    min_log_mel = min_log_hz / f_sp
    logstep = np.log(6.4) / 27.0
    return np.where(f >= min_log_hz,
                    min_log_mel + np.log(np.maximum(f, 1e-10) / min_log_hz) / logstep,
                    mels)


def _mel_to_hz(m):
    m = np.asarray(m, dtype=np.float64)
    f_sp = 200.0 / 3
    freqs = f_sp * m
    min_log_hz = 1000.0
    min_log_mel = min_log_hz / f_sp
    logstep = np.log(6.4) / 27.0
    return np.where(m >= min_log_mel,
                    min_log_hz * np.exp(logstep * (m - min_log_mel)),
                    freqs)


def make_mel_filters(sr, n_fft, n_mels):
    """Slaney-style mel filterbank (same construction as whisper's mel_filters.npz)."""
    n_freq = n_fft // 2 + 1
    fftfreqs = np.linspace(0.0, sr / 2.0, n_freq)
    mel_pts = _mel_to_hz(np.linspace(_hz_to_mel(0.0), _hz_to_mel(sr / 2.0), n_mels + 2))
    fdiff = np.diff(mel_pts)
    ramps = mel_pts[:, None] - fftfreqs[None, :]
    lower = -ramps[:-2] / fdiff[:-1, None]
    upper = ramps[2:] / fdiff[1:, None]
    weights = np.maximum(0.0, np.minimum(lower, upper))
    enorm = 2.0 / (mel_pts[2:n_mels + 2] - mel_pts[:n_mels])
    weights = weights * enorm[:, None]
    return weights.astype(np.float32)          # (n_mels, n_freq)


def make_stft_constants(n_fft):
    """Periodic Hann window + real-DFT matrices.

    Returns both the unfused window/cos/sin (used by the pure-JAX reference) and the
    fused, zero-padded, windowed [cos | -sin] matrix used by the kernel.
    """
    n = np.arange(n_fft, dtype=np.float64)
    window = 0.5 * (1.0 - np.cos(2.0 * np.pi * n / n_fft))            # torch.hann_window
    n_freq = n_fft // 2 + 1
    k = np.arange(n_freq, dtype=np.float64)
    ang = 2.0 * np.pi * np.outer(n, k) / n_fft                         # (n_fft, n_freq)
    dft_cos = np.cos(ang)
    dft_sin = -np.sin(ang)
    # Window folded in + cos/sin concatenated + zero-padded to lane-dense 2*n_fft cols.
    dft_w = np.zeros((n_fft, 2 * n_fft), dtype=np.float32)
    dft_w[:, :n_freq] = (window[:, None] * dft_cos).astype(np.float32)
    dft_w[:, n_fft:n_fft + n_freq] = (window[:, None] * dft_sin).astype(np.float32)
    return {
        "window": window.astype(np.float32),        # (n_fft,)
        "dft_cos": dft_cos.astype(np.float32),      # (n_fft, n_freq)
        "dft_sin": dft_sin.astype(np.float32),      # (n_fft, n_freq)
        "dft_w": dft_w,                             # (n_fft, 2*n_fft)
    }


def pad_mel_filters(mel_filters, n_fft):
    """Zero-pad mel filterbank columns n_freq -> n_fft so the mel matmul keeps K=128."""
    n_mels, n_freq = mel_filters.shape
    mel_w = np.zeros((n_mels, n_fft), dtype=np.float32)
    mel_w[:, :n_freq] = mel_filters
    return mel_w


# ----------------------------- Pallas kernel --------------------------------
def logmel_kernel(frames_ref, dftw_ref, melw_ref, out_ref):
    # frames_ref: (B*F, n_fft)  raw (un-windowed) STFT frames, batch collapsed
    # dftw_ref:   (n_fft, 2*n_fft) windowed [cos | -sin], zero-padded lanes
    # melw_ref:   (n_mels, n_fft)  mel filterbank, zero-padded lanes
    # out_ref:    (B, n_mels, F)   PyTorch output layout, written directly
    n_fft = dftw_ref.shape[0]
    nb, n_mels, n_frames = out_ref.shape

    # One lane-dense MXU matmul for the whole batch: real and imag in one pass.
    # DEFAULT precision = single-pass bf16 MXU (perf review #3); validated at 2e-3.
    y = jnp.dot(frames_ref[...], dftw_ref[...],
                preferred_element_type=jnp.float32,
                precision=jax.lax.Precision.DEFAULT)       # (B*F, 2*n_fft)
    real = y[:, :n_fft]                                    # 128-lane aligned slice
    imag = y[:, n_fft:]                                    # 128-lane aligned slice
    power = real * real + imag * imag                      # (B*F, n_fft); padded bins = 0

    melw = melw_ref[...]                                   # (n_mels, n_fft)
    for b in range(nb):                                    # B is small & static: unrolled
        power_b = power[b * n_frames:(b + 1) * n_frames, :]   # (F, n_fft), sublane-aligned
        # dot(mel_pad, power^T) emits the (n_mels, F) PyTorch orientation directly.
        mel_b = jnp.dot(melw, power_b.T,
                        preferred_element_type=jnp.float32,
                        precision=jax.lax.Precision.HIGHEST)   # (n_mels, F)
        logmel = jnp.log10(jnp.maximum(mel_b, 1e-10))
        logmel = jnp.maximum(logmel, jnp.max(logmel) - 8.0)    # per-batch dynamic range
        out_ref[b] = (logmel + 4.0) / 4.0


# ----------------------------- wrapper ---------------------------------------
def log_mel_spectrogram(x, seq_len, dft_w, mel_w,
                        n_fft=N_FFT, hop_length=HOP_LENGTH, padding=PADDING):
    """Matches LogMelSpectogram.forward: returns ((B, n_mels, F), seq_len // hop)."""
    # get_seq_len: floor(seq_len / hop).to(long)
    seq_len_out = jnp.floor(seq_len.astype(jnp.float32) / hop_length).astype(jnp.int32)

    if padding > 0:
        x = jnp.pad(x, ((0, 0), (0, padding)))

    B, T = x.shape
    n_frames = T // hop_length            # torch.stft(center=True) gives 1+T//hop, last dropped
    n_mels = mel_w.shape[0]

    # torch.stft center=True, pad_mode='reflect'
    xp = jnp.pad(x, ((0, 0), (n_fft // 2, n_fft // 2)), mode="reflect")
    idx = jnp.arange(n_frames)[:, None] * hop_length + jnp.arange(n_fft)[None, :]
    # TODO(synk): at real Whisper sizes, move framing in-kernel (strided pl.ds reads of the
    # reflect-padded waveform) to remove this n_fft/hop (~4x) HBM blowup and the XLA gather.
    frames = xp[:, idx].reshape(B * n_frames, n_fft)       # (B*F, n_fft), batch collapsed

    flops = (2 * (B * n_frames) * n_fft * (2 * n_fft)      # DFT matmul
             + B * 2 * n_mels * n_fft * n_frames)          # mel matmuls
    transcendentals = B * n_mels * n_frames                # log10
    bytes_accessed = 4 * (B * n_frames * n_fft + n_fft * 2 * n_fft
                          + n_mels * n_fft + B * n_mels * n_frames)

    out = pl.pallas_call(
        logmel_kernel,
        out_shape=jax.ShapeDtypeStruct((B, n_mels, n_frames), jnp.float32),
        grid_spec=pltpu.PrefetchScalarGridSpec(
            num_scalar_prefetch=0,
            # Batch collapsed into one invocation (B=2 is overhead-bound as a grid).
            # For real batch sizes use grid=(B,) + dimension_semantics=("parallel",)
            # so v7x's two TensorCores each take half the batch.
            grid=(1,),
            in_specs=[
                pl.BlockSpec((B * n_frames, n_fft), lambda i: (0, 0)),
                pl.BlockSpec((n_fft, 2 * n_fft), lambda i: (0, 0)),
                pl.BlockSpec((n_mels, n_fft), lambda i: (0, 0)),
            ],
            out_specs=pl.BlockSpec((B, n_mels, n_frames), lambda i: (0, 0, 0)),
        ),
        compiler_params=pltpu.CompilerParams(dimension_semantics=("arbitrary",)),
        cost_estimate=pl.CostEstimate(flops=flops,
                                      transcendentals=transcendentals,
                                      bytes_accessed=bytes_accessed),
    )(frames, dft_w, mel_w)

    return out, seq_len_out


# ----------------------------- pure-JAX reference (for validation) ----------
def reference(x, seq_len, consts, mel_filters, n_fft=N_FFT, hop_length=HOP_LENGTH):
    window = jnp.asarray(consts["window"])
    dft_cos = jnp.asarray(consts["dft_cos"])
    dft_sin = jnp.asarray(consts["dft_sin"])
    seq_len_out = jnp.floor(seq_len.astype(jnp.float32) / hop_length).astype(jnp.int32)
    B, T = x.shape
    n_frames = T // hop_length
    xp = jnp.pad(x, ((0, 0), (n_fft // 2, n_fft // 2)), mode="reflect")
    idx = jnp.arange(n_frames)[:, None] * hop_length + jnp.arange(n_fft)[None, :]
    frames = xp[:, idx] * window[None, None, :]
    real = jnp.einsum("bfn,nk->bfk", frames, dft_cos, precision=jax.lax.Precision.HIGHEST)
    imag = jnp.einsum("bfn,nk->bfk", frames, dft_sin, precision=jax.lax.Precision.HIGHEST)
    power = real**2 + imag**2                                # (B, F, n_freq)
    mel = jnp.einsum("mk,bfk->bmf", jnp.asarray(mel_filters), power,
                     precision=jax.lax.Precision.HIGHEST)    # (B, n_mels, F)
    logmel = jnp.log10(jnp.maximum(mel, 1e-10))
    logmel = jnp.maximum(logmel, jnp.max(logmel, axis=(1, 2), keepdims=True) - 8.0)
    return (logmel + 4.0) / 4.0, seq_len_out


# ----------------------------- main ------------------------------------------
if __name__ == "__main__":
    B, T = 2, 1024
    key = jax.random.PRNGKey(0)
    x = jax.random.normal(key, (B, T), dtype=jnp.float32)
    seq_len = jnp.array([float(T), float(T - 200)], dtype=jnp.float32)

    mel_filters = make_mel_filters(SR, N_FFT, N_MELS)        # (n_mels, n_freq)
    consts = make_stft_constants(N_FFT)
    dft_w = jnp.asarray(consts["dft_w"])                     # (n_fft, 2*n_fft)
    mel_w = jnp.asarray(pad_mel_filters(mel_filters, N_FFT)) # (n_mels, n_fft)

    out, out_seq = log_mel_spectrogram(x, seq_len, dft_w, mel_w)
    out = jax.block_until_ready(out)
    out_seq = jax.block_until_ready(out_seq)

    ref_out, ref_seq = reference(x, seq_len, consts, mel_filters)

    assert out.shape == (B, N_MELS, T // HOP_LENGTH)
    assert out.dtype == jnp.float32
    # Tolerance 2e-3 accounts for the intentional DEFAULT-precision (bf16) DFT matmul;
    # the mel matmul stays HIGHEST so the squared DFT error is not compounded further.
    np.testing.assert_allclose(np.asarray(out), np.asarray(ref_out), atol=2e-3, rtol=2e-3)
    np.testing.assert_array_equal(np.asarray(out_seq), np.asarray(ref_seq))

    print("KERNEL_OK")
</pallas_src>

<mosaic_0001>
module attributes {stable_mosaic.version = 11 : i64} {
  func.func @logmel_kernel(%arg0: i32, %arg1: memref<64x128xf32, #tpu.memory_space<vmem>>, %arg2: memref<128x256xf32, #tpu.memory_space<vmem>>, %arg3: memref<16x128xf32, #tpu.memory_space<vmem>>, %arg4: memref<2x16x32xf32, #tpu.memory_space<vmem>>) attributes {dimension_semantics = [#tpu.dimension_semantics<arbitrary>], iteration_bounds = array<i64: 1>, scalar_prefetch = 0 : i64, scratch_operands = 0 : i64, tpu.core_type = #tpu.core_type<tc>, window_params = [{pipeline_mode = #tpu.pipeline_mode<synchronous>, transform_indices = @transform_0, window_bounds = array<i64: 64, 128>}, {pipeline_mode = #tpu.pipeline_mode<synchronous>, transform_indices = @transform_1, window_bounds = array<i64: 128, 256>}, {pipeline_mode = #tpu.pipeline_mode<synchronous>, transform_indices = @transform_2, window_bounds = array<i64: 16, 128>}, {pipeline_mode = #tpu.pipeline_mode<synchronous>, transform_indices = @transform_3, window_bounds = array<i64: 2, 16, 32>}]} {
    %c0 = arith.constant 0 : index
    %c0_0 = arith.constant 0 : index
    %0 = vector.load %arg1[%c0, %c0_0] : memref<64x128xf32, #tpu.memory_space<vmem>>, vector<64x128xf32>
    %c0_1 = arith.constant 0 : index
    %c0_2 = arith.constant 0 : index
    %1 = vector.load %arg2[%c0_1, %c0_2] : memref<128x256xf32, #tpu.memory_space<vmem>>, vector<128x256xf32>
    %cst = arith.constant dense<0.000000e+00> : vector<64x256xf32>
    %2 = tpu.matmul %0, %1, %cst {dimension_numbers = #tpu.dot_dimension_numbers<[1], [0], [0], [1], [0, 0, 1, 1], [], []>} : vector<64x128xf32>, vector<128x256xf32>, vector<64x256xf32> -> vector<64x256xf32>
    %3 = vector.extract_strided_slice %2 {offsets = [0, 0], sizes = [64, 128], strides = [1, 1]} : vector<64x256xf32> to vector<64x128xf32>
    %4 = vector.extract_strided_slice %2 {offsets = [0, 128], sizes = [64, 128], strides = [1, 1]} : vector<64x256xf32> to vector<64x128xf32>
    %5 = arith.mulf %3, %3 : vector<64x128xf32>
    %6 = arith.mulf %4, %4 : vector<64x128xf32>
    %7 = arith.addf %5, %6 : vector<64x128xf32>
    %c0_3 = arith.constant 0 : index
    %c0_4 = arith.constant 0 : index
    %8 = vector.load %arg3[%c0_3, %c0_4] : memref<16x128xf32, #tpu.memory_space<vmem>>, vector<16x128xf32>
    %9 = vector.extract_strided_slice %7 {offsets = [0, 0], sizes = [32, 128], strides = [1, 1]} : vector<64x128xf32> to vector<32x128xf32>
    %10 = tpu.transpose %9, [1, 0] : vector<32x128xf32> -> vector<128x32xf32>
    %cst_5 = arith.constant dense<0.000000e+00> : vector<16x32xf32>
    %11 = tpu.matmul %8, %10, %cst_5 {dimension_numbers = #tpu.dot_dimension_numbers<[1], [0], [0], [1], [0, 0, 1, 1], [], []>, precision = #tpu.contract_precision<fp32>} : vector<16x128xf32>, vector<128x32xf32>, vector<16x32xf32> -> vector<16x32xf32>
    %cst_6 = arith.constant 1.000000e-10 : f32
    %12 = vector.broadcast %cst_6 : f32 to vector<16x32xf32>
    %13 = arith.maximumf %11, %12 : vector<16x32xf32>
    %14 = math.log %13 : vector<16x32xf32>
    %cst_7 = arith.constant 0.434294492 : f32
    %15 = vector.broadcast %cst_7 : f32 to vector<16x32xf32>
    %16 = arith.mulf %14, %15 : vector<16x32xf32>
    %17 = vector.shape_cast %16 : vector<16x32xf32> to vector<1x16x32xf32>
    %cst_8 = arith.constant dense<0xFF800000> : vector<1xf32>
    %18 = vector.multi_reduction <maximumf>, %17, %cst_8 [1, 2] : vector<1x16x32xf32> to vector<1xf32>
    %19 = vector.shape_cast %18 : vector<1xf32> to vector<1x1x1xf32>
    %20 = vector.extract %19[0, 0, 0] : f32 from vector<1x1x1xf32>
    %cst_9 = arith.constant 8.000000e+00 : f32
    %21 = arith.subf %20, %cst_9 : f32
    %22 = vector.broadcast %21 : f32 to vector<16x32xf32>
    %23 = arith.maximumf %16, %22 : vector<16x32xf32>
    %cst_10 = arith.constant 4.000000e+00 : f32
    %24 = vector.broadcast %cst_10 : f32 to vector<16x32xf32>
    %25 = arith.addf %23, %24 : vector<16x32xf32>
    %cst_11 = arith.constant 4.000000e+00 : f32
    %26 = vector.broadcast %cst_11 : f32 to vector<16x32xf32>
    %27 = arith.divf %25, %26 : vector<16x32xf32>
    %c0_12 = arith.constant 0 : index
    %c0_13 = arith.constant 0 : index
    %c0_14 = arith.constant 0 : index
    %28 = vector.load %arg4[%c0_12, %c0_13, %c0_14] : memref<2x16x32xf32, #tpu.memory_space<vmem>>, vector<1x16x32xf32>
    %29 = vector.shape_cast %28 : vector<1x16x32xf32> to vector<16x32xf32>
    %30 = vector.shape_cast %27 : vector<16x32xf32> to vector<1x16x32xf32>
    tpu.vector_store %arg4[%c0_12, %c0_13, %c0_14], %30 {strides = array<i32>} : memref<2x16x32xf32, #tpu.memory_space<vmem>>, vector<1x16x32xf32>,
    %31 = vector.extract_strided_slice %7 {offsets = [32, 0], sizes = [32, 128], strides = [1, 1]} : vector<64x128xf32> to vector<32x128xf32>
    %32 = tpu.transpose %31, [1, 0] : vector<32x128xf32> -> vector<128x32xf32>
    %cst_15 = arith.constant dense<0.000000e+00> : vector<16x32xf32>
    %33 = tpu.matmul %8, %32, %cst_15 {dimension_numbers = #tpu.dot_dimension_numbers<[1], [0], [0], [1], [0, 0, 1, 1], [], []>, precision = #tpu.contract_precision<fp32>} : vector<16x128xf32>, vector<128x32xf32>, vector<16x32xf32> -> vector<16x32xf32>
    %cst_16 = arith.constant 1.000000e-10 : f32
    %34 = vector.broadcast %cst_16 : f32 to vector<16x32xf32>
    %35 = arith.maximumf %33, %34 : vector<16x32xf32>
    %36 = math.log %35 : vector<16x32xf32>
    %cst_17 = arith.constant 0.434294492 : f32
    %37 = vector.broadcast %cst_17 : f32 to vector<16x32xf32>
    %38 = arith.mulf %36, %37 : vector<16x32xf32>
    %39 = vector.shape_cast %38 : vector<16x32xf32> to vector<1x16x32xf32>
    %cst_18 = arith.constant dense<0xFF800000> : vector<1xf32>
    %40 = vector.multi_reduction <maximumf>, %39, %cst_18 [1, 2] : vector<1x16x32xf32> to vector<1xf32>
    %41 = vector.shape_cast %40 : vector<1xf32> to vector<1x1x1xf32>
    %42 = vector.extract %41[0, 0, 0] : f32 from vector<1x1x1xf32>
    %cst_19 = arith.constant 8.000000e+00 : f32
    %43 = arith.subf %42, %cst_19 : f32
    %44 = vector.broadcast %43 : f32 to vector<16x32xf32>
    %45 = arith.maximumf %38, %44 : vector<16x32xf32>
    %cst_20 = arith.constant 4.000000e+00 : f32
    %46 = vector.broadcast %cst_20 : f32 to vector<16x32xf32>
    %47 = arith.addf %45, %46 : vector<16x32xf32>
    %cst_21 = arith.constant 4.000000e+00 : f32
    %48 = vector.broadcast %cst_21 : f32 to vector<16x32xf32>
    %49 = arith.divf %47, %48 : vector<16x32xf32>
    %c1 = arith.constant 1 : index
    %c0_22 = arith.constant 0 : index
    %c0_23 = arith.constant 0 : index
    %50 = vector.load %arg4[%c1, %c0_22, %c0_23] : memref<2x16x32xf32, #tpu.memory_space<vmem>>, vector<1x16x32xf32>
    %51 = vector.shape_cast %50 : vector<1x16x32xf32> to vector<16x32xf32>
    %52 = vector.shape_cast %49 : vector<16x32xf32> to vector<1x16x32xf32>
    tpu.vector_store %arg4[%c1, %c0_22, %c0_23], %52 {strides = array<i32>} : memref<2x16x32xf32, #tpu.memory_space<vmem>>, vector<1x16x32xf32>,
    return
  }
  func.func @transform_0(%arg0: i32) -> (i32, i32) {
    %c0_i32 = arith.constant 0 : i32
    %c0_i32_0 = arith.constant 0 : i32
    %c0_i32_1 = arith.constant 0 : i32
    return %c0_i32, %c0_i32_0 : i32, i32
  }
  func.func @transform_1(%arg0: i32) -> (i32, i32) {
    %c0_i32 = arith.constant 0 : i32
    %c0_i32_0 = arith.constant 0 : i32
    %c0_i32_1 = arith.constant 0 : i32
    return %c0_i32, %c0_i32_0 : i32, i32
  }
  func.func @transform_2(%arg0: i32) -> (i32, i32) {
    %c0_i32 = arith.constant 0 : i32
    %c0_i32_0 = arith.constant 0 : i32
    %c0_i32_1 = arith.constant 0 : i32
    return %c0_i32, %c0_i32_0 : i32, i32
  }
  func.func @transform_3(%arg0: i32) -> (i32, i32, i32) {
    %c0_i32 = arith.constant 0 : i32
    %c0_i32_0 = arith.constant 0 : i32
    %c0_i32_1 = arith.constant 0 : i32
    %c0_i32_2 = arith.constant 0 : i32
    return %c0_i32, %c0_i32_0, %c0_i32_1 : i32, i32, i32
  }
}

</mosaic_0001>

<llo_original>
// kernel: tpu_custom_call.1
$region0: #{tpu_custom_call.1}
  #allocation0 [shape = 'u32[]', space=smem, size = 0x4, offset = 0x4, fixed_abs, tag = 'smem constant byte address 0x4 - core index']
  #allocation1 [shape = 'u32[144,128]{1,0:T(1,128)}', space=vmem, size = 0x12000, scoped, tag = 'internal scratch']
  %s0 = inlined_call_operand.hbm [shape: f32[64,128], index: 0, kind: input, shape index: {}]
  %s1 = inlined_call_operand.hbm [shape: f32[128,256], index: 1, kind: input, shape index: {}]
  %s2 = inlined_call_operand.hbm [shape: f32[16,128], index: 2, kind: input, shape index: {}]
  %s3 = inlined_call_operand.hbm [shape: f32[2,16,32], index: 3, kind: output, shape index: {}]
  %s4 = sld [smem:[#allocation0]]
  $region34: #{tpu_custom_call.1} parent=0
    _
  %s6 = ssub.s32 1, %s4
  %s7 = scalar_select 0, %s6, %s4
  $region1: #{tpu_custom_call.1} parent=0
    #allocation2 [shape = 'u8[32768]{0}', space=vmem, size = 0x8000, scoped, tag = 'input window, operand 0, single buffered']
    #allocation3 [shape = 's32[1]{0}', space=sflag, size = 0x4, scoped, tag = 'scoped memory for tpu_custom_call.1']
    #allocation4 [shape = 's32[1]{0}', space=sflag, size = 0x4, scoped, tag = 'scoped memory for tpu_custom_call.1']
    #allocation5 [shape = 'u8[131072]{0}', space=vmem, size = 0x20000, scoped, tag = 'input window, operand 1, single buffered']
    #allocation6 [shape = 's32[1]{0}', space=sflag, size = 0x4, scoped, tag = 'scoped memory for tpu_custom_call.1']
    #allocation7 [shape = 'u8[8192]{0}', space=vmem, size = 0x2000, scoped, tag = 'input window, operand 2, single buffered']
    #allocation8 [shape = 'u8[16384]{0}', space=vmem, size = 0x4000, scoped, tag = 'output window, operand 0, single buffered']
    %8 = vsyncpa [#allocation3], 0
    %9 = vsyncpa [#allocation6], 0
    %10 = vsyncpa [#allocation4], 0
    // Predicated region
    $region2: #{tpu_custom_call.1} parent=1 // pred_check
      _
    $region3: #{tpu_custom_call.1} parent=1 // pred_check_branch
      %12 = sbr.rel (0) target = $region5
    $region4: #{tpu_custom_call.1} parent=1 // pred_region
      %s14 = ssub.s32 1024, 1024
      %15 = vsyncadd [#allocation3], %s14
      %s16 = sshll.u32 [#allocation2], 4
      %s17 = int_to_ptr.vmem [resolvable:$true] %s16
      %22 = dma.hbm_to_vmem [thread:$0]  %s0, 1024, %s17, [#allocation3], 128, 128, 8
    $region5: #{tpu_custom_call.1} parent=1 // pred_fallthru
      _
    // Predicated region
    $region6: #{tpu_custom_call.1} parent=1 // pred_check
      _
    $region7: #{tpu_custom_call.1} parent=1 // pred_check_branch
      %24 = sbr.rel (0) target = $region9
    $region8: #{tpu_custom_call.1} parent=1 // pred_region
      %s26 = ssub.s32 4096, 4096
      %27 = vsyncadd [#allocation6], %s26
      %s28 = sshll.u32 [#allocation5], 4
      %s29 = int_to_ptr.vmem [resolvable:$true] %s28
      %34 = dma.hbm_to_vmem [thread:$0]  %s1, 4096, %s29, [#allocation6], 256, 256, 16
    $region9: #{tpu_custom_call.1} parent=1 // pred_fallthru
      _
    // Predicated region
    $region10: #{tpu_custom_call.1} parent=1 // pred_check
      _
    $region11: #{tpu_custom_call.1} parent=1 // pred_check_branch
      %36 = sbr.rel (0) target = $region13
    $region12: #{tpu_custom_call.1} parent=1 // pred_region
      %s38 = ssub.s32 256, 256
      %39 = vsyncadd [#allocation6], %s38
      %s40 = sshll.u32 [#allocation7], 4
      %s41 = int_to_ptr.vmem [resolvable:$true] %s40
      %46 = dma.hbm_to_vmem [thread:$0]  %s2, 256, %s41, [#allocation6], 128, 128, 8
    $region13: #{tpu_custom_call.1} parent=1 // pred_fallthru
      _
    // Predicated region
    $region14: #{tpu_custom_call.1} parent=1 // pred_check
      _
    $region15: #{tpu_custom_call.1} parent=1 // pred_check_branch
      %48 = sbr.rel (0) target = $region17
    $region16: #{tpu_custom_call.1} parent=1 // pred_region
      %49 = dma.done [#allocation3], 1024
    $region17: #{tpu_custom_call.1} parent=1 // pred_fallthru
      _
    // Predicated region
    $region18: #{tpu_custom_call.1} parent=1 // pred_check
      _
    $region19: #{tpu_custom_call.1} parent=1 // pred_check_branch
      %51 = sbr.rel (0) target = $region21
    $region20: #{tpu_custom_call.1} parent=1 // pred_region
      %52 = dma.done [#allocation6], 4096
    $region21: #{tpu_custom_call.1} parent=1 // pred_fallthru
      _
    // Predicated region
    $region22: #{tpu_custom_call.1} parent=1 // pred_check
      _
    $region23: #{tpu_custom_call.1} parent=1 // pred_check_branch
      %54 = sbr.rel (0) target = $region25
    $region24: #{tpu_custom_call.1} parent=1 // pred_region
      %55 = dma.done [#allocation6], 256
    $region25: #{tpu_custom_call.1} parent=1 // pred_fallthru
      _
    %v56 = vld [vmem:[#allocation2] sm:$0xff]
    %v57 = vld [vmem:[#allocation2 + $0x8] sm:$0xff]
    %v58 = vld [vmem:[#allocation2 + $0x10] sm:$0xff]
    %v59 = vld [vmem:[#allocation2 + $0x18] sm:$0xff]
    %v60 = vld [vmem:[#allocation2 + $0x20] sm:$0xff]
    %v61 = vld [vmem:[#allocation2 + $0x28] sm:$0xff]
    %v62 = vld [vmem:[#allocation2 + $0x30] sm:$0xff]
    %v63 = vld [vmem:[#allocation2 + $0x38] sm:$0xff]
    %v64 = vld [vmem:[#allocation5] sm:$0xff]
    %v65 = vld [vmem:[#allocation5 + $0x8] sm:$0xff]
    %v66 = vld [vmem:[#allocation5 + $0x10] sm:$0xff]
    %v67 = vld [vmem:[#allocation5 + $0x18] sm:$0xff]
    %v68 = vld [vmem:[#allocation5 + $0x20] sm:$0xff]
    %v69 = vld [vmem:[#allocation5 + $0x28] sm:$0xff]
    %v70 = vld [vmem:[#allocation5 + $0x30] sm:$0xff]
    %v71 = vld [vmem:[#allocation5 + $0x38] sm:$0xff]
    %v72 = vld [vmem:[#allocation5 + $0x40] sm:$0xff]
    %v73 = vld [vmem:[#allocation5 + $0x48] sm:$0xff]
    %v74 = vld [vmem:[#allocation5 + $0x50] sm:$0xff]
    %v75 = vld [vmem:[#allocation5 + $0x58] sm:$0xff]
    %v76 = vld [vmem:[#allocation5 + $0x60] sm:$0xff]
    %v77 = vld [vmem:[#allocation5 + $0x68] sm:$0xff]
    %v78 = vld [vmem:[#allocation5 + $0x70] sm:$0xff]
    %v79 = vld [vmem:[#allocation5 + $0x78] sm:$0xff]
    %v80 = vld [vmem:[#allocation5 + $0x80] sm:$0xff]
    %v81 = vld [vmem:[#allocation5 + $0x88] sm:$0xff]
    %v82 = vld [vmem:[#allocation5 + $0x90] sm:$0xff]
    %v83 = vld [vmem:[#allocation5 + $0x98] sm:$0xff]
    %v84 = vld [vmem:[#allocation5 + $0xa0] sm:$0xff]
    %v85 = vld [vmem:[#allocation5 + $0xa8] sm:$0xff]
    %v86 = vld [vmem:[#allocation5 + $0xb0] sm:$0xff]
    %v87 = vld [vmem:[#allocation5 + $0xb8] sm:$0xff]
    %v88 = vld [vmem:[#allocation5 + $0xc0] sm:$0xff]
    %v89 = vld [vmem:[#allocation5 + $0xc8] sm:$0xff]
    %v90 = vld [vmem:[#allocation5 + $0xd0] sm:$0xff]
    %v91 = vld [vmem:[#allocation5 + $0xd8] sm:$0xff]
    %v92 = vld [vmem:[#allocation5 + $0xe0] sm:$0xff]
    %v93 = vld [vmem:[#allocation5 + $0xe8] sm:$0xff]
    %v94 = vld [vmem:[#allocation5 + $0xf0] sm:$0xff]
    %v95 = vld [vmem:[#allocation5 + $0xf8] sm:$0xff]
    %96 = vmatprep.subr.mxu0 %v95
    %97 = vmatpush1.msra.mxu0 %v94
    %98 = vmatprep.subr.mxu0 %v93
    %99 = vmatpush1.msra.mxu0 %v92
    %100 = vmatprep.subr.mxu0 %v91
    %101 = vmatpush1.msra.mxu0 %v90
    %102 = vmatprep.subr.mxu0 %v89
    %103 = vmatpush1.msra.mxu0 %v88
    %104 = vmatprep.subr.mxu0 %v87
    %105 = vmatpush1.msra.mxu0 %v86
    %106 = vmatprep.subr.mxu0 %v85
    %107 = vmatpush1.msra.mxu0 %v84
    %108 = vmatprep.subr.mxu0 %v83
    %109 = vmatpush1.msra.mxu0 %v82
    %110 = vmatprep.subr.mxu0 %v81
    %111 = vmatpush1.msra.mxu0 %v80
    %112 = vmatprep.subr.mxu0 %v79
    %113 = vmatpush1.msra.mxu0 %v78
    %114 = vmatprep.subr.mxu0 %v77
    %115 = vmatpush1.msra.mxu0 %v76
    %116 = vmatprep.subr.mxu0 %v75
    %117 = vmatpush1.msra.mxu0 %v74
    %118 = vmatprep.subr.mxu0 %v73
    %119 = vmatpush1.msra.mxu0 %v72
    %120 = vmatprep.subr.mxu0 %v71
    %121 = vmatpush1.msra.mxu0 %v70
    %122 = vmatprep.subr.mxu0 %v69
    %123 = vmatpush1.msra.mxu0 %v68
    %124 = vmatprep.subr.mxu0 %v67
    %125 = vmatpush1.msra.mxu0 %v66
    %126 = vmatprep.subr.mxu0 %v65
    %127 = vmatpush1.msra.mxu0 %v64
    %128 = vmatprep.subr.mxu0 0.0
    %129 = vmatpush2.msra.mxu0 0.0
    %130 = vmatprep.subr.mxu0 0.0
    %131 = vmatpush2.msra.mxu0 0.0
    %132 = vmatprep.subr.mxu0 0.0
    %133 = vmatpush2.msra.mxu0 0.0
    %134 = vmatprep.subr.mxu0 0.0
    %135 = vmatpush2.msra.mxu0 0.0
    %136 = vmatprep.subr.mxu0 0.0
    %137 = vmatpush2.msra.mxu0 0.0
    %138 = vmatprep.subr.mxu0 0.0
    %139 = vmatpush2.msra.mxu0 0.0
    %140 = vmatprep.subr.mxu0 0.0
    %141 = vmatpush2.msra.mxu0 0.0
    %142 = vmatprep.subr.mxu0 0.0
    %143 = vmatpush2.msra.mxu0 0.0
    %144 = vmatprep.subr.mxu0 0.0
    %145 = vmatpush2.msra.mxu0 0.0
    %146 = vmatprep.subr.mxu0 0.0
    %147 = vmatpush2.msra.mxu0 0.0
    %148 = vmatprep.subr.mxu0 0.0
    %149 = vmatpush2.msra.mxu0 0.0
    %150 = vmatprep.subr.mxu0 0.0
    %151 = vmatpush2.msra.mxu0 0.0
    %152 = vmatprep.subr.mxu0 0.0
    %153 = vmatpush2.msra.mxu0 0.0
    %154 = vmatprep.subr.mxu0 0.0
    %155 = vmatpush2.msra.mxu0 0.0
    %156 = vmatprep.subr.mxu0 0.0
    %157 = vmatpush2.msra.mxu0 0.0
    %158 = vmatprep.subr.mxu0 0.0
    %159 = vmatpush2.msra.mxu0 0.0
    %160 = vmatprep.mubr.f32.mxu0 0.0
    %161 = vmatmul.mubr.f32.gmra.mxu0 %v56
    %v162 = vpop.f32.mrf.mxu0
    %v163 = vadd.f32 0.0, %v162
    %v164 = vpop.f32.mrf.mxu0
    %v165 = vadd.f32 0.0, %v164
    %166 = vmatprep.mubr.f32.mxu0 0.0
    %167 = vmatmul.mubr.f32.gmra.mxu0 %v57
    %v168 = vpop.f32.mrf.mxu0
    %v169 = vadd.f32 0.0, %v168
    %v170 = vpop.f32.mrf.mxu0
    %v171 = vadd.f32 0.0, %v170
    %172 = vmatprep.mubr.f32.mxu0 0.0
    %173 = vmatmul.mubr.f32.gmra.mxu0 %v58
    %v174 = vpop.f32.mrf.mxu0
    %v175 = vadd.f32 0.0, %v174
    %v176 = vpop.f32.mrf.mxu0
    %v177 = vadd.f32 0.0, %v176
    %178 = vmatprep.mubr.f32.mxu0 0.0
    %179 = vmatmul.mubr.f32.gmra.mxu0 %v59
    %v180 = vpop.f32.mrf.mxu0
    %v181 = vadd.f32 0.0, %v180
    %v182 = vpop.f32.mrf.mxu0
    %v183 = vadd.f32 0.0, %v182
    %184 = vmatprep.mubr.f32.mxu0 0.0
    %185 = vmatmul.mubr.f32.gmra.mxu0 %v60
    %v186 = vpop.f32.mrf.mxu0
    %v187 = vadd.f32 0.0, %v186
    %v188 = vpop.f32.mrf.mxu0
    %v189 = vadd.f32 0.0, %v188
    %190 = vmatprep.mubr.f32.mxu0 0.0
    %191 = vmatmul.mubr.f32.gmra.mxu0 %v61
    %v192 = vpop.f32.mrf.mxu0
    %v193 = vadd.f32 0.0, %v192
    %v194 = vpop.f32.mrf.mxu0
    %v195 = vadd.f32 0.0, %v194
    %196 = vmatprep.mubr.f32.mxu0 0.0
    %197 = vmatmul.mubr.f32.gmra.mxu0 %v62
    %v198 = vpop.f32.mrf.mxu0
    %v199 = vadd.f32 0.0, %v198
    %v200 = vpop.f32.mrf.mxu0
    %v201 = vadd.f32 0.0, %v200
    %202 = vmatprep.mubr.f32.mxu0 0.0
    %203 = vmatmul.mubr.f32.gmra.mxu0 %v63
    %v204 = vpop.f32.mrf.mxu0
    %v205 = vadd.f32 0.0, %v204
    %v206 = vpop.f32.mrf.mxu0
    %v207 = vadd.f32 0.0, %v206
    %208 = vdwg.mxu0
    %v209 = vmul.f32 %v163, %v163
    %v210 = vmul.f32 %v169, %v169
    %v211 = vmul.f32 %v175, %v175
    %v212 = vmul.f32 %v181, %v181
    %v213 = vmul.f32 %v187, %v187
    %v214 = vmul.f32 %v193, %v193
    %v215 = vmul.f32 %v199, %v199
    %v216 = vmul.f32 %v205, %v205
    %v217 = vmul.f32 %v165, %v165
    %v218 = vmul.f32 %v171, %v171
    %v219 = vmul.f32 %v177, %v177
    %v220 = vmul.f32 %v183, %v183
    %v221 = vmul.f32 %v189, %v189
    %v222 = vmul.f32 %v195, %v195
    %v223 = vmul.f32 %v201, %v201
    %v224 = vmul.f32 %v207, %v207
    %v225 = vadd.f32 %v209, %v217
    %v226 = vadd.f32 %v210, %v218
    %v227 = vadd.f32 %v211, %v219
    %v228 = vadd.f32 %v212, %v220
    %v229 = vadd.f32 %v213, %v221
    %v230 = vadd.f32 %v214, %v222
    %v231 = vadd.f32 %v215, %v223
    %v232 = vadd.f32 %v216, %v224
    %v233 = vld [vmem:[#allocation7] sm:$0xff]
    %v234 = vld [vmem:[#allocation7 + $0x8] sm:$0xff]
    %235 = vmatprep.subr.mxu0 0.0
    %236 = vmatpush1.xpose.msra.mxu0 0.0
    %237 = vmatprep.subr.mxu0 0.0
    %238 = vmatpush1.xpose.msra.mxu0 0.0
    %239 = vmatprep.subr.mxu0 0.0
    %240 = vmatpush1.xpose.msra.mxu0 0.0
    %241 = vmatprep.subr.mxu0 0.0
    %242 = vmatpush1.xpose.msra.mxu0 0.0
    %243 = vmatprep.subr.mxu0 0.0
    %244 = vmatpush1.xpose.msra.mxu0 0.0
    %245 = vmatprep.subr.mxu0 0.0
    %246 = vmatpush1.xpose.msra.mxu0 0.0
    %247 = vmatprep.subr.mxu0 0.0
    %248 = vmatpush1.xpose.msra.mxu0 0.0
    %249 = vmatprep.subr.mxu0 0.0
    %250 = vmatpush1.xpose.msra.mxu0 0.0
    %251 = vmatprep.subr.mxu0 0.0
    %252 = vmatpush1.xpose.msra.mxu0 0.0
    %253 = vmatprep.subr.mxu0 0.0
    %254 = vmatpush1.xpose.msra.mxu0 0.0
    %255 = vmatprep.subr.mxu0 0.0
    %256 = vmatpush1.xpose.msra.mxu0 0.0
    %257 = vmatprep.subr.mxu0 0.0
    %258 = vmatpush1.xpose.msra.mxu0 0.0
    %259 = vmatprep.subr.mxu0 0.0
    %v260 = vand.u32 %v228, 4294901760
    %261 = vmatpush1.xpose.msra.mxu0 %v260
    %262 = vmatprep.subr.mxu0 0.0
    %v263 = vand.u32 %v227, 4294901760
    %264 = vmatpush1.xpose.msra.mxu0 %v263
    %265 = vmatprep.subr.mxu0 0.0
    %v266 = vand.u32 %v226, 4294901760
    %267 = vmatpush1.xpose.msra.mxu0 %v266
    %268 = vmatprep.subr.mxu0 0.0
    %v269 = vand.u32 %v225, 4294901760
    %270 = vmatpush1.xpose.msra.mxu0 %v269
    %271 = vmatprep.subr.mxu0 0.0
    %272 = vmatpush2.xpose.msra.mxu0 0.0
    %273 = vmatprep.subr.mxu0 0.0
    %274 = vmatpush2.xpose.msra.mxu0 0.0
    %275 = vmatprep.subr.mxu0 0.0
    %276 = vmatpush2.xpose.msra.mxu0 0.0
    %277 = vmatprep.subr.mxu0 0.0
    %278 = vmatpush2.xpose.msra.mxu0 0.0
    %279 = vmatprep.subr.mxu0 0.0
    %280 = vmatpush2.xpose.msra.mxu0 0.0
    %281 = vmatprep.subr.mxu0 0.0
    %282 = vmatpush2.xpose.msra.mxu0 0.0
    %283 = vmatprep.subr.mxu0 0.0
    %284 = vmatpush2.xpose.msra.mxu0 0.0
    %285 = vmatprep.subr.mxu0 0.0
    %286 = vmatpush2.xpose.msra.mxu0 0.0
    %287 = vmatprep.subr.mxu0 0.0
    %288 = vmatpush2.xpose.msra.mxu0 0.0
    %289 = vmatprep.subr.mxu0 0.0
    %290 = vmatpush2.xpose.msra.mxu0 0.0
    %291 = vmatprep.subr.mxu0 0.0
    %292 = vmatpush2.xpose.msra.mxu0 0.0
    %293 = vmatprep.subr.mxu0 0.0
    %294 = vmatpush2.xpose.msra.mxu0 0.0
    %295 = vmatprep.subr.mxu0 0.0
    %296 = vmatpush2.xpose.msra.mxu0 0.0
    %297 = vmatprep.subr.mxu0 0.0
    %298 = vmatpush2.xpose.msra.mxu0 0.0
    %299 = vmatprep.subr.mxu0 0.0
    %300 = vmatpush2.xpose.msra.mxu0 0.0
    %301 = vmatprep.subr.mxu0 0.0
    %302 = vmatpush2.xpose.msra.mxu0 0.0
    %303 = vmatprep.mubr.f32.mxu0 0.0
    %v304 = vand.u32 %v233, 4294901760
    %v305 = vsub.f32 %v233, %v304
    %v306 = vand.u32 %v305, 4294901760
    %v307 = vsub.f32 %v305, %v306
    %v308 = vand.u32 %v307, 4294901760
    %309 = vmatmul.mubr.f32.gmra.mxu0 %v308
    %v310 = vpop.f32.mrf.mxu0
    %v311 = vadd.f32 0.0, %v310
    %v312 = vpop.f32.mrf.mxu0
    %313 = vmatprep.mubr.f32.mxu0 0.0
    %v314 = vand.u32 %v234, 4294901760
    %v315 = vsub.f32 %v234, %v314
    %v316 = vand.u32 %v315, 4294901760
    %v317 = vsub.f32 %v315, %v316
    %v318 = vand.u32 %v317, 4294901760
    %319 = vmatmul.mubr.f32.gmra.mxu0 %v318
    %v320 = vpop.f32.mrf.mxu0
    %v321 = vadd.f32 0.0, %v320
    %v322 = vpop.f32.mrf.mxu0
    %323 = vdwg.mxu0
    %324 = vmatprep.subr.mxu0 0.0
    %325 = vmatpush1.xpose.msra.mxu0 0.0
    %326 = vmatprep.subr.mxu0 0.0
    %327 = vmatpush1.xpose.msra.mxu0 0.0
    %328 = vmatprep.subr.mxu0 0.0
    %329 = vmatpush1.xpose.msra.mxu0 0.0
    %330 = vmatprep.subr.mxu0 0.0
    %331 = vmatpush1.xpose.msra.mxu0 0.0
    %332 = vmatprep.subr.mxu0 0.0
    %333 = vmatpush1.xpose.msra.mxu0 0.0
    %334 = vmatprep.subr.mxu0 0.0
    %335 = vmatpush1.xpose.msra.mxu0 0.0
    %336 = vmatprep.subr.mxu0 0.0
    %337 = vmatpush1.xpose.msra.mxu0 0.0
    %338 = vmatprep.subr.mxu0 0.0
    %339 = vmatpush1.xpose.msra.mxu0 0.0
    %340 = vmatprep.subr.mxu0 0.0
    %341 = vmatpush1.xpose.msra.mxu0 0.0
    %342 = vmatprep.subr.mxu0 0.0
    %343 = vmatpush1.xpose.msra.mxu0 0.0
    %344 = vmatprep.subr.mxu0 0.0
    %345 = vmatpush1.xpose.msra.mxu0 0.0
    %346 = vmatprep.subr.mxu0 0.0
    %347 = vmatpush1.xpose.msra.mxu0 0.0
    %348 = vmatprep.subr.mxu0 0.0
    %v349 = vand.u32 %v228, 4294901760
    %v350 = vsub.f32 %v228, %v349
    %v351 = vand.u32 %v350, 4294901760
    %v352 = vsub.f32 %v350, %v351
    %v353 = vand.u32 %v352, 4294901760
    %354 = vmatpush1.xpose.msra.mxu0 %v353
    %355 = vmatprep.subr.mxu0 0.0
    %v356 = vand.u32 %v227, 4294901760
    %v357 = vsub.f32 %v227, %v356
    %v358 = vand.u32 %v357, 4294901760
    %v359 = vsub.f32 %v357, %v358
    %v360 = vand.u32 %v359, 4294901760
    %361 = vmatpush1.xpose.msra.mxu0 %v360
    %362 = vmatprep.subr.mxu0 0.0
    %v363 = vand.u32 %v226, 4294901760
    %v364 = vsub.f32 %v226, %v363
    %v365 = vand.u32 %v364, 4294901760
    %v366 = vsub.f32 %v364, %v365
    %v367 = vand.u32 %v366, 4294901760
    %368 = vmatpush1.xpose.msra.mxu0 %v367
    %369 = vmatprep.subr.mxu0 0.0
    %v370 = vand.u32 %v225, 4294901760
    %v371 = vsub.f32 %v225, %v370
    %v372 = vand.u32 %v371, 4294901760
    %v373 = vsub.f32 %v371, %v372
    %v374 = vand.u32 %v373, 4294901760
    %375 = vmatpush1.xpose.msra.mxu0 %v374
    %376 = vmatprep.subr.mxu0 0.0
    %377 = vmatpush2.xpose.msra.mxu0 0.0
    %378 = vmatprep.subr.mxu0 0.0
    %379 = vmatpush2.xpose.msra.mxu0 0.0
    %380 = vmatprep.subr.mxu0 0.0
    %381 = vmatpush2.xpose.msra.mxu0 0.0
    %382 = vmatprep.subr.mxu0 0.0
    %383 = vmatpush2.xpose.msra.mxu0 0.0
    %384 = vmatprep.subr.mxu0 0.0
    %385 = vmatpush2.xpose.msra.mxu0 0.0
    %386 = vmatprep.subr.mxu0 0.0
    %387 = vmatpush2.xpose.msra.mxu0 0.0
    %388 = vmatprep.subr.mxu0 0.0
    %389 = vmatpush2.xpose.msra.mxu0 0.0
    %390 = vmatprep.subr.mxu0 0.0
    %391 = vmatpush2.xpose.msra.mxu0 0.0
    %392 = vmatprep.subr.mxu0 0.0
    %393 = vmatpush2.xpose.msra.mxu0 0.0
    %394 = vmatprep.subr.mxu0 0.0
    %395 = vmatpush2.xpose.msra.mxu0 0.0
    %396 = vmatprep.subr.mxu0 0.0
    %397 = vmatpush2.xpose.msra.mxu0 0.0
    %398 = vmatprep.subr.mxu0 0.0
    %399 = vmatpush2.xpose.msra.mxu0 0.0
    %400 = vmatprep.subr.mxu0 0.0
    %401 = vmatpush2.xpose.msra.mxu0 0.0
    %402 = vmatprep.subr.mxu0 0.0
    %403 = vmatpush2.xpose.msra.mxu0 0.0
    %404 = vmatprep.subr.mxu0 0.0
    %405 = vmatpush2.xpose.msra.mxu0 0.0
    %406 = vmatprep.subr.mxu0 0.0
    %407 = vmatpush2.xpose.msra.mxu0 0.0
    %408 = vmatprep.mubr.f32.mxu0 0.0
    %v409 = vand.u32 %v233, 4294901760
    %410 = vmatmul.mubr.f32.gmra.mxu0 %v409
    %v411 = vpop.f32.mrf.mxu0
    %v412 = vadd.f32 %v311, %v411
    %v413 = vpop.f32.mrf.mxu0
    %414 = vmatprep.mubr.f32.mxu0 0.0
    %v415 = vand.u32 %v234, 4294901760
    %416 = vmatmul.mubr.f32.gmra.mxu0 %v415
    %v417 = vpop.f32.mrf.mxu0
    %v418 = vadd.f32 %v321, %v417
    %v419 = vpop.f32.mrf.mxu0
    %420 = vdwg.mxu0
    %421 = vmatprep.subr.mxu0 0.0
    %422 = vmatpush1.xpose.msra.mxu0 0.0
    %423 = vmatprep.subr.mxu0 0.0
    %424 = vmatpush1.xpose.msra.mxu0 0.0
    %425 = vmatprep.subr.mxu0 0.0
    %426 = vmatpush1.xpose.msra.mxu0 0.0
    %427 = vmatprep.subr.mxu0 0.0
    %428 = vmatpush1.xpose.msra.mxu0 0.0
    %429 = vmatprep.subr.mxu0 0.0
    %430 = vmatpush1.xpose.msra.mxu0 0.0
    %431 = vmatprep.subr.mxu0 0.0
    %432 = vmatpush1.xpose.msra.mxu0 0.0
    %433 = vmatprep.subr.mxu0 0.0
    %434 = vmatpush1.xpose.msra.mxu0 0.0
    %435 = vmatprep.subr.mxu0 0.0
    %436 = vmatpush1.xpose.msra.mxu0 0.0
    %437 = vmatprep.subr.mxu0 0.0
    %438 = vmatpush1.xpose.msra.mxu0 0.0
    %439 = vmatprep.subr.mxu0 0.0
    %440 = vmatpush1.xpose.msra.mxu0 0.0
    %441 = vmatprep.subr.mxu0 0.0
    %442 = vmatpush1.xpose.msra.mxu0 0.0
    %443 = vmatprep.subr.mxu0 0.0
    %444 = vmatpush1.xpose.msra.mxu0 0.0
    %445 = vmatprep.subr.mxu0 0.0
    %v446 = vand.u32 %v228, 4294901760
    %v447 = vsub.f32 %v228, %v446
    %448 = vmatpush1.xpose.msra.mxu0 %v447
    %449 = vmatprep.subr.mxu0 0.0
    %v450 = vand.u32 %v227, 4294901760
    %v451 = vsub.f32 %v227, %v450
    %452 = vmatpush1.xpose.msra.mxu0 %v451
    %453 = vmatprep.subr.mxu0 0.0
    %v454 = vand.u32 %v226, 4294901760
    %v455 = vsub.f32 %v226, %v454
    %456 = vmatpush1.xpose.msra.mxu0 %v455
    %457 = vmatprep.subr.mxu0 0.0
    %v458 = vand.u32 %v225, 4294901760
    %v459 = vsub.f32 %v225, %v458
    %460 = vmatpush1.xpose.msra.mxu0 %v459
    %461 = vmatprep.subr.mxu0 0.0
    %462 = vmatpush2.xpose.msra.mxu0 0.0
    %463 = vmatprep.subr.mxu0 0.0
    %464 = vmatpush2.xpose.msra.mxu0 0.0
    %465 = vmatprep.subr.mxu0 0.0
    %466 = vmatpush2.xpose.msra.mxu0 0.0
    %467 = vmatprep.subr.mxu0 0.0
    %468 = vmatpush2.xpose.msra.mxu0 0.0
    %469 = vmatprep.subr.mxu0 0.0
    %470 = vmatpush2.xpose.msra.mxu0 0.0
    %471 = vmatprep.subr.mxu0 0.0
    %472 = vmatpush2.xpose.msra.mxu0 0.0
    %473 = vmatprep.subr.mxu0 0.0
    %474 = vmatpush2.xpose.msra.mxu0 0.0
    %475 = vmatprep.subr.mxu0 0.0
    %476 = vmatpush2.xpose.msra.mxu0 0.0
    %477 = vmatprep.subr.mxu0 0.0
    %478 = vmatpush2.xpose.msra.mxu0 0.0
    %479 = vmatprep.subr.mxu0 0.0
    %480 = vmatpush2.xpose.msra.mxu0 0.0
    %481 = vmatprep.subr.mxu0 0.0
    %482 = vmatpush2.xpose.msra.mxu0 0.0
    %483 = vmatprep.subr.mxu0 0.0
    %484 = vmatpush2.xpose.msra.mxu0 0.0
    %485 = vmatprep.subr.mxu0 0.0
    %486 = vmatpush2.xpose.msra.mxu0 0.0
    %487 = vmatprep.subr.mxu0 0.0
    %488 = vmatpush2.xpose.msra.mxu0 0.0
    %489 = vmatprep.subr.mxu0 0.0
    %490 = vmatpush2.xpose.msra.mxu0 0.0
    %491 = vmatprep.subr.mxu0 0.0
    %492 = vmatpush2.xpose.msra.mxu0 0.0
    %493 = vmatprep.mubr.f32.mxu0 0.0
    %v494 = vand.u32 %v233, 4294901760
    %v495 = vsub.f32 %v233, %v494
    %496 = vmatmul.mubr.f32.gmra.mxu0 %v495
    %v497 = vpop.f32.mrf.mxu0
    %v498 = vadd.f32 %v412, %v497
    %v499 = vpop.f32.mrf.mxu0
    %500 = vmatprep.mubr.f32.mxu0 0.0
    %v501 = vand.u32 %v234, 4294901760
    %v502 = vsub.f32 %v234, %v501
    %503 = vmatmul.mubr.f32.gmra.mxu0 %v502
    %v504 = vpop.f32.mrf.mxu0
    %v505 = vadd.f32 %v418, %v504
    %v506 = vpop.f32.mrf.mxu0
    %507 = vdwg.mxu0
    %508 = vmatprep.subr.mxu0 0.0
    %509 = vmatpush1.xpose.msra.mxu0 0.0
    %510 = vmatprep.subr.mxu0 0.0
    %511 = vmatpush1.xpose.msra.mxu0 0.0
    %512 = vmatprep.subr.mxu0 0.0
    %513 = vmatpush1.xpose.msra.mxu0 0.0
    %514 = vmatprep.subr.mxu0 0.0
    %515 = vmatpush1.xpose.msra.mxu0 0.0
    %516 = vmatprep.subr.mxu0 0.0
    %517 = vmatpush1.xpose.msra.mxu0 0.0
    %518 = vmatprep.subr.mxu0 0.0
    %519 = vmatpush1.xpose.msra.mxu0 0.0
    %520 = vmatprep.subr.mxu0 0.0
    %521 = vmatpush1.xpose.msra.mxu0 0.0
    %522 = vmatprep.subr.mxu0 0.0
    %523 = vmatpush1.xpose.msra.mxu0 0.0
    %524 = vmatprep.subr.mxu0 0.0
    %525 = vmatpush1.xpose.msra.mxu0 0.0
    %526 = vmatprep.subr.mxu0 0.0
    %527 = vmatpush1.xpose.msra.mxu0 0.0
    %528 = vmatprep.subr.mxu0 0.0
    %529 = vmatpush1.xpose.msra.mxu0 0.0
    %530 = vmatprep.subr.mxu0 0.0
    %531 = vmatpush1.xpose.msra.mxu0 0.0
    %532 = vmatprep.subr.mxu0 0.0
    %v533 = vand.u32 %v228, 4294901760
    %534 = vmatpush1.xpose.msra.mxu0 %v533
    %535 = vmatprep.subr.mxu0 0.0
    %v536 = vand.u32 %v227, 4294901760
    %537 = vmatpush1.xpose.msra.mxu0 %v536
    %538 = vmatprep.subr.mxu0 0.0
    %v539 = vand.u32 %v226, 4294901760
    %540 = vmatpush1.xpose.msra.mxu0 %v539
    %541 = vmatprep.subr.mxu0 0.0
    %v542 = vand.u32 %v225, 4294901760
    %543 = vmatpush1.xpose.msra.mxu0 %v542
    %544 = vmatprep.subr.mxu0 0.0
    %545 = vmatpush2.xpose.msra.mxu0 0.0
    %546 = vmatprep.subr.mxu0 0.0
    %547 = vmatpush2.xpose.msra.mxu0 0.0
    %548 = vmatprep.subr.mxu0 0.0
    %549 = vmatpush2.xpose.msra.mxu0 0.0
    %550 = vmatprep.subr.mxu0 0.0
    %551 = vmatpush2.xpose.msra.mxu0 0.0
    %552 = vmatprep.subr.mxu0 0.0
    %553 = vmatpush2.xpose.msra.mxu0 0.0
    %554 = vmatprep.subr.mxu0 0.0
    %555 = vmatpush2.xpose.msra.mxu0 0.0
    %556 = vmatprep.subr.mxu0 0.0
    %557 = vmatpush2.xpose.msra.mxu0 0.0
    %558 = vmatprep.subr.mxu0 0.0
    %559 = vmatpush2.xpose.msra.mxu0 0.0
    %560 = vmatprep.subr.mxu0 0.0
    %561 = vmatpush2.xpose.msra.mxu0 0.0
    %562 = vmatprep.subr.mxu0 0.0
    %563 = vmatpush2.xpose.msra.mxu0 0.0
    %564 = vmatprep.subr.mxu0 0.0
    %565 = vmatpush2.xpose.msra.mxu0 0.0
    %566 = vmatprep.subr.mxu0 0.0
    %567 = vmatpush2.xpose.msra.mxu0 0.0
    %568 = vmatprep.subr.mxu0 0.0
    %569 = vmatpush2.xpose.msra.mxu0 0.0
    %570 = vmatprep.subr.mxu0 0.0
    %571 = vmatpush2.xpose.msra.mxu0 0.0
    %572 = vmatprep.subr.mxu0 0.0
    %573 = vmatpush2.xpose.msra.mxu0 0.0
    %574 = vmatprep.subr.mxu0 0.0
    %575 = vmatpush2.xpose.msra.mxu0 0.0
    %576 = vmatprep.mubr.f32.mxu0 0.0
    %v577 = vand.u32 %v233, 4294901760
    %v578 = vsub.f32 %v233, %v577
    %v579 = vand.u32 %v578, 4294901760
    %580 = vmatmul.mubr.f32.gmra.mxu0 %v579
    %v581 = vpop.f32.mrf.mxu0
    %v582 = vadd.f32 %v498, %v581
    %v583 = vpop.f32.mrf.mxu0
    %584 = vmatprep.mubr.f32.mxu0 0.0
    %v585 = vand.u32 %v234, 4294901760
    %v586 = vsub.f32 %v234, %v585
    %v587 = vand.u32 %v586, 4294901760
    %588 = vmatmul.mubr.f32.gmra.mxu0 %v587
    %v589 = vpop.f32.mrf.mxu0
    %v590 = vadd.f32 %v505, %v589
    %v591 = vpop.f32.mrf.mxu0
    %592 = vdwg.mxu0
    %593 = vmatprep.subr.mxu0 0.0
    %594 = vmatpush1.xpose.msra.mxu0 0.0
    %595 = vmatprep.subr.mxu0 0.0
    %596 = vmatpush1.xpose.msra.mxu0 0.0
    %597 = vmatprep.subr.mxu0 0.0
    %598 = vmatpush1.xpose.msra.mxu0 0.0
    %599 = vmatprep.subr.mxu0 0.0
    %600 = vmatpush1.xpose.msra.mxu0 0.0
    %601 = vmatprep.subr.mxu0 0.0
    %602 = vmatpush1.xpose.msra.mxu0 0.0
    %603 = vmatprep.subr.mxu0 0.0
    %604 = vmatpush1.xpose.msra.mxu0 0.0
    %605 = vmatprep.subr.mxu0 0.0
    %606 = vmatpush1.xpose.msra.mxu0 0.0
    %607 = vmatprep.subr.mxu0 0.0
    %608 = vmatpush1.xpose.msra.mxu0 0.0
    %609 = vmatprep.subr.mxu0 0.0
    %610 = vmatpush1.xpose.msra.mxu0 0.0
    %611 = vmatprep.subr.mxu0 0.0
    %612 = vmatpush1.xpose.msra.mxu0 0.0
    %613 = vmatprep.subr.mxu0 0.0
    %614 = vmatpush1.xpose.msra.mxu0 0.0
    %615 = vmatprep.subr.mxu0 0.0
    %616 = vmatpush1.xpose.msra.mxu0 0.0
    %617 = vmatprep.subr.mxu0 0.0
    %v618 = vand.u32 %v228, 4294901760
    %v619 = vsub.f32 %v228, %v618
    %v620 = vand.u32 %v619, 4294901760
    %621 = vmatpush1.xpose.msra.mxu0 %v620
    %622 = vmatprep.subr.mxu0 0.0
    %v623 = vand.u32 %v227, 4294901760
    %v624 = vsub.f32 %v227, %v623
    %v625 = vand.u32 %v624, 4294901760
    %626 = vmatpush1.xpose.msra.mxu0 %v625
    %627 = vmatprep.subr.mxu0 0.0
    %v628 = vand.u32 %v226, 4294901760
    %v629 = vsub.f32 %v226, %v628
    %v630 = vand.u32 %v629, 4294901760
    %631 = vmatpush1.xpose.msra.mxu0 %v630
    %632 = vmatprep.subr.mxu0 0.0
    %v633 = vand.u32 %v225, 4294901760
    %v634 = vsub.f32 %v225, %v633
    %v635 = vand.u32 %v634, 4294901760
    %636 = vmatpush1.xpose.msra.mxu0 %v635
    %637 = vmatprep.subr.mxu0 0.0
    %638 = vmatpush2.xpose.msra.mxu0 0.0
    %639 = vmatprep.subr.mxu0 0.0
    %640 = vmatpush2.xpose.msra.mxu0 0.0
    %641 = vmatprep.subr.mxu0 0.0
    %642 = vmatpush2.xpose.msra.mxu0 0.0
    %643 = vmatprep.subr.mxu0 0.0
    %644 = vmatpush2.xpose.msra.mxu0 0.0
    %645 = vmatprep.subr.mxu0 0.0
    %646 = vmatpush2.xpose.msra.mxu0 0.0
    %647 = vmatprep.subr.mxu0 0.0
    %648 = vmatpush2.xpose.msra.mxu0 0.0
    %649 = vmatprep.subr.mxu0 0.0
    %650 = vmatpush2.xpose.msra.mxu0 0.0
    %651 = vmatprep.subr.mxu0 0.0
    %652 = vmatpush2.xpose.msra.mxu0 0.0
    %653 = vmatprep.subr.mxu0 0.0
    %654 = vmatpush2.xpose.msra.mxu0 0.0
    %655 = vmatprep.subr.mxu0 0.0
    %656 = vmatpush2.xpose.msra.mxu0 0.0
    %657 = vmatprep.subr.mxu0 0.0
    %658 = vmatpush2.xpose.msra.mxu0 0.0
    %659 = vmatprep.subr.mxu0 0.0
    %660 = vmatpush2.xpose.msra.mxu0 0.0
    %661 = vmatprep.subr.mxu0 0.0
    %662 = vmatpush2.xpose.msra.mxu0 0.0
    %663 = vmatprep.subr.mxu0 0.0
    %664 = vmatpush2.xpose.msra.mxu0 0.0
    %665 = vmatprep.subr.mxu0 0.0
    %666 = vmatpush2.xpose.msra.mxu0 0.0
    %667 = vmatprep.subr.mxu0 0.0
    %668 = vmatpush2.xpose.msra.mxu0 0.0
    %669 = vmatprep.mubr.f32.mxu0 0.0
    %v670 = vand.u32 %v233, 4294901760
    %671 = vmatmul.mubr.f32.gmra.mxu0 %v670
    %v672 = vpop.f32.mrf.mxu0
    %v673 = vadd.f32 %v582, %v672
    %v674 = vpop.f32.mrf.mxu0
    %675 = vmatprep.mubr.f32.mxu0 0.0
    %v676 = vand.u32 %v234, 4294901760
    %677 = vmatmul.mubr.f32.gmra.mxu0 %v676
    %v678 = vpop.f32.mrf.mxu0
    %v679 = vadd.f32 %v590, %v678
    %v680 = vpop.f32.mrf.mxu0
    %681 = vdwg.mxu0
    %682 = vmatprep.subr.mxu0 0.0
    %683 = vmatpush1.xpose.msra.mxu0 0.0
    %684 = vmatprep.subr.mxu0 0.0
    %685 = vmatpush1.xpose.msra.mxu0 0.0
    %686 = vmatprep.subr.mxu0 0.0
    %687 = vmatpush1.xpose.msra.mxu0 0.0
    %688 = vmatprep.subr.mxu0 0.0
    %689 = vmatpush1.xpose.msra.mxu0 0.0
    %690 = vmatprep.subr.mxu0 0.0
    %691 = vmatpush1.xpose.msra.mxu0 0.0
    %692 = vmatprep.subr.mxu0 0.0
    %693 = vmatpush1.xpose.msra.mxu0 0.0
    %694 = vmatprep.subr.mxu0 0.0
    %695 = vmatpush1.xpose.msra.mxu0 0.0
    %696 = vmatprep.subr.mxu0 0.0
    %697 = vmatpush1.xpose.msra.mxu0 0.0
    %698 = vmatprep.subr.mxu0 0.0
    %699 = vmatpush1.xpose.msra.mxu0 0.0
    %700 = vmatprep.subr.mxu0 0.0
    %701 = vmatpush1.xpose.msra.mxu0 0.0
    %702 = vmatprep.subr.mxu0 0.0
    %703 = vmatpush1.xpose.msra.mxu0 0.0
    %704 = vmatprep.subr.mxu0 0.0
    %705 = vmatpush1.xpose.msra.mxu0 0.0
    %706 = vmatprep.subr.mxu0 0.0
    %v707 = vand.u32 %v228, 4294901760
    %708 = vmatpush1.xpose.msra.mxu0 %v707
    %709 = vmatprep.subr.mxu0 0.0
    %v710 = vand.u32 %v227, 4294901760
    %711 = vmatpush1.xpose.msra.mxu0 %v710
    %712 = vmatprep.subr.mxu0 0.0
    %v713 = vand.u32 %v226, 4294901760
    %714 = vmatpush1.xpose.msra.mxu0 %v713
    %715 = vmatprep.subr.mxu0 0.0
    %v716 = vand.u32 %v225, 4294901760
    %717 = vmatpush1.xpose.msra.mxu0 %v716
    %718 = vmatprep.subr.mxu0 0.0
    %719 = vmatpush2.xpose.msra.mxu0 0.0
    %720 = vmatprep.subr.mxu0 0.0
    %721 = vmatpush2.xpose.msra.mxu0 0.0
    %722 = vmatprep.subr.mxu0 0.0
    %723 = vmatpush2.xpose.msra.mxu0 0.0
    %724 = vmatprep.subr.mxu0 0.0
    %725 = vmatpush2.xpose.msra.mxu0 0.0
    %726 = vmatprep.subr.mxu0 0.0
    %727 = vmatpush2.xpose.msra.mxu0 0.0
    %728 = vmatprep.subr.mxu0 0.0
    %729 = vmatpush2.xpose.msra.mxu0 0.0
    %730 = vmatprep.subr.mxu0 0.0
    %731 = vmatpush2.xpose.msra.mxu0 0.0
    %732 = vmatprep.subr.mxu0 0.0
    %733 = vmatpush2.xpose.msra.mxu0 0.0
    %734 = vmatprep.subr.mxu0 0.0
    %735 = vmatpush2.xpose.msra.mxu0 0.0
    %736 = vmatprep.subr.mxu0 0.0
    %737 = vmatpush2.xpose.msra.mxu0 0.0
    %738 = vmatprep.subr.mxu0 0.0
    %739 = vmatpush2.xpose.msra.mxu0 0.0
    %740 = vmatprep.subr.mxu0 0.0
    %741 = vmatpush2.xpose.msra.mxu0 0.0
    %742 = vmatprep.subr.mxu0 0.0
    %743 = vmatpush2.xpose.msra.mxu0 0.0
    %744 = vmatprep.subr.mxu0 0.0
    %745 = vmatpush2.xpose.msra.mxu0 0.0
    %746 = vmatprep.subr.mxu0 0.0
    %747 = vmatpush2.xpose.msra.mxu0 0.0
    %748 = vmatprep.subr.mxu0 0.0
    %749 = vmatpush2.xpose.msra.mxu0 0.0
    %750 = vmatprep.mubr.f32.mxu0 0.0
    %v751 = vand.u32 %v233, 4294901760
    %752 = vmatmul.mubr.f32.gmra.mxu0 %v751
    %v753 = vpop.f32.mrf.mxu0
    %v754 = vadd.f32 %v673, %v753
    %v755 = vpop.f32.mrf.mxu0
    %756 = vmatprep.mubr.f32.mxu0 0.0
    %v757 = vand.u32 %v234, 4294901760
    %758 = vmatmul.mubr.f32.gmra.mxu0 %v757
    %v759 = vpop.f32.mrf.mxu0
    %v760 = vadd.f32 %v679, %v759
    %v761 = vpop.f32.mrf.mxu0
    %762 = vdwg.mxu0
    %v763 = vmax.f32 %v754, 1e-10
    %v764 = vmax.f32 %v760, 1e-10
    %v765 = vlog2.pop %v763
    %v766 = vmul.f32 %v765, 0.6931472
    %v767 = vlog2.pop %v764
    %v768 = vmul.f32 %v767, 0.6931472
    %v769 = vmul.f32 %v766, 0.4342945
    %v770 = vmul.f32 %v768, 0.4342945
    %vm771 = vcmask 261120
    %v772 = vsel %vm771, %v769, -inf
    %v773 = vsel %vm771, %v770, -inf
    %v774 = vmax.f32 %v772, %v773
    %775 = vmax.xlane.f32.xlu0 %v774
    %v776 = vpop.xlane.xlu0 %775
    %v777 = vrot.slane %v776, 4
    %v778 = vmax.f32 %v776, %v777
    %v779 = vrot.slane %v778, 2
    %v780 = vmax.f32 %v778, %v779
    %v781 = vrot.slane %v780, 1
    %v782 = vmax.f32 %v780, %v781
    %s783 = vtos %v782
    %s784 = ssub.f32 %s783, 8.0
    %v785 = vstv %s784
    %v786 = vmax.f32 %v769, %v785
    %v787 = vmax.f32 %v770, %v785
    %v788 = vadd.f32 %v786, 4.0
    %v789 = vadd.f32 %v787, 4.0
    %v790 = vrcp.pop 4.0
    %v791 = vmul.f32 %v788, %v790
    %v792 = vmul.f32 %v789, %v790
    %793 = vst.msk [vmem:[#allocation8] sm:$0xff] %vm771, %v791
    %794 = vst.msk [vmem:[#allocation8 + $0x8] sm:$0xff] %vm771, %v792
    %795 = vmatprep.subr.mxu0 0.0
    %796 = vmatpush1.xpose.msra.mxu0 0.0
    %797 = vmatprep.subr.mxu0 0.0
    %798 = vmatpush1.xpose.msra.mxu0 0.0
    %799 = vmatprep.subr.mxu0 0.0
    %800 = vmatpush1.xpose.msra.mxu0 0.0
    %801 = vmatprep.subr.mxu0 0.0
    %802 = vmatpush1.xpose.msra.mxu0 0.0
    %803 = vmatprep.subr.mxu0 0.0
    %804 = vmatpush1.xpose.msra.mxu0 0.0
    %805 = vmatprep.subr.mxu0 0.0
    %806 = vmatpush1.xpose.msra.mxu0 0.0
    %807 = vmatprep.subr.mxu0 0.0
    %808 = vmatpush1.xpose.msra.mxu0 0.0
    %809 = vmatprep.subr.mxu0 0.0
    %810 = vmatpush1.xpose.msra.mxu0 0.0
    %811 = vmatprep.subr.mxu0 0.0
    %812 = vmatpush1.xpose.msra.mxu0 0.0
    %813 = vmatprep.subr.mxu0 0.0
    %814 = vmatpush1.xpose.msra.mxu0 0.0
    %815 = vmatprep.subr.mxu0 0.0
    %816 = vmatpush1.xpose.msra.mxu0 0.0
    %817 = vmatprep.subr.mxu0 0.0
    %818 = vmatpush1.xpose.msra.mxu0 0.0
    %819 = vmatprep.subr.mxu0 0.0
    %v820 = vand.u32 %v232, 4294901760
    %821 = vmatpush1.xpose.msra.mxu0 %v820
    %822 = vmatprep.subr.mxu0 0.0
    %v823 = vand.u32 %v231, 4294901760
    %824 = vmatpush1.xpose.msra.mxu0 %v823
    %825 = vmatprep.subr.mxu0 0.0
    %v826 = vand.u32 %v230, 4294901760
    %827 = vmatpush1.xpose.msra.mxu0 %v826
    %828 = vmatprep.subr.mxu0 0.0
    %v829 = vand.u32 %v229, 4294901760
    %830 = vmatpush1.xpose.msra.mxu0 %v829
    %831 = vmatprep.subr.mxu0 0.0
    %832 = vmatpush2.xpose.msra.mxu0 0.0
    %833 = vmatprep.subr.mxu0 0.0
    %834 = vmatpush2.xpose.msra.mxu0 0.0
    %835 = vmatprep.subr.mxu0 0.0
    %836 = vmatpush2.xpose.msra.mxu0 0.0
    %837 = vmatprep.subr.mxu0 0.0
    %838 = vmatpush2.xpose.msra.mxu0 0.0
    %839 = vmatprep.subr.mxu0 0.0
    %840 = vmatpush2.xpose.msra.mxu0 0.0
    %841 = vmatprep.subr.mxu0 0.0
    %842 = vmatpush2.xpose.msra.mxu0 0.0
    %843 = vmatprep.subr.mxu0 0.0
    %844 = vmatpush2.xpose.msra.mxu0 0.0
    %845 = vmatprep.subr.mxu0 0.0
    %846 = vmatpush2.xpose.msra.mxu0 0.0
    %847 = vmatprep.subr.mxu0 0.0
    %848 = vmatpush2.xpose.msra.mxu0 0.0
    %849 = vmatprep.subr.mxu0 0.0
    %850 = vmatpush2.xpose.msra.mxu0 0.0
    %851 = vmatprep.subr.mxu0 0.0
    %852 = vmatpush2.xpose.msra.mxu0 0.0
    %853 = vmatprep.subr.mxu0 0.0
    %854 = vmatpush2.xpose.msra.mxu0 0.0
    %855 = vmatprep.subr.mxu0 0.0
    %856 = vmatpush2.xpose.msra.mxu0 0.0
    %857 = vmatprep.subr.mxu0 0.0
    %858 = vmatpush2.xpose.msra.mxu0 0.0
    %859 = vmatprep.subr.mxu0 0.0
    %860 = vmatpush2.xpose.msra.mxu0 0.0
    %861 = vmatprep.subr.mxu0 0.0
    %862 = vmatpush2.xpose.msra.mxu0 0.0
    %863 = vmatprep.mubr.f32.mxu0 0.0
    %v864 = vand.u32 %v233, 4294901760
    %v865 = vsub.f32 %v233, %v864
    %v866 = vand.u32 %v865, 4294901760
    %v867 = vsub.f32 %v865, %v866
    %v868 = vand.u32 %v867, 4294901760
    %869 = vmatmul.mubr.f32.gmra.mxu0 %v868
    %v870 = vpop.f32.mrf.mxu0
    %v871 = vadd.f32 0.0, %v870
    %v872 = vpop.f32.mrf.mxu0
    %873 = vmatprep.mubr.f32.mxu0 0.0
    %v874 = vand.u32 %v234, 4294901760
    %v875 = vsub.f32 %v234, %v874
    %v876 = vand.u32 %v875, 4294901760
    %v877 = vsub.f32 %v875, %v876
    %v878 = vand.u32 %v877, 4294901760
    %879 = vmatmul.mubr.f32.gmra.mxu0 %v878
    %v880 = vpop.f32.mrf.mxu0
    %v881 = vadd.f32 0.0, %v880
    %v882 = vpop.f32.mrf.mxu0
    %883 = vdwg.mxu0
    %884 = vmatprep.subr.mxu0 0.0
    %885 = vmatpush1.xpose.msra.mxu0 0.0
    %886 = vmatprep.subr.mxu0 0.0
    %887 = vmatpush1.xpose.msra.mxu0 0.0
    %888 = vmatprep.subr.mxu0 0.0
    %889 = vmatpush1.xpose.msra.mxu0 0.0
    %890 = vmatprep.subr.mxu0 0.0
    %891 = vmatpush1.xpose.msra.mxu0 0.0
    %892 = vmatprep.subr.mxu0 0.0
    %893 = vmatpush1.xpose.msra.mxu0 0.0
    %894 = vmatprep.subr.mxu0 0.0
    %895 = vmatpush1.xpose.msra.mxu0 0.0
    %896 = vmatprep.subr.mxu0 0.0
    %897 = vmatpush1.xpose.msra.mxu0 0.0
    %898 = vmatprep.subr.mxu0 0.0
    %899 = vmatpush1.xpose.msra.mxu0 0.0
    %900 = vmatprep.subr.mxu0 0.0
    %901 = vmatpush1.xpose.msra.mxu0 0.0
    %902 = vmatprep.subr.mxu0 0.0
    %903 = vmatpush1.xpose.msra.mxu0 0.0
    %904 = vmatprep.subr.mxu0 0.0
    %905 = vmatpush1.xpose.msra.mxu0 0.0
    %906 = vmatprep.subr.mxu0 0.0
    %907 = vmatpush1.xpose.msra.mxu0 0.0
    %908 = vmatprep.subr.mxu0 0.0
    %v909 = vand.u32 %v232, 4294901760
    %v910 = vsub.f32 %v232, %v909
    %v911 = vand.u32 %v910, 4294901760
    %v912 = vsub.f32 %v910, %v911
    %v913 = vand.u32 %v912, 4294901760
    %914 = vmatpush1.xpose.msra.mxu0 %v913
    %915 = vmatprep.subr.mxu0 0.0
    %v916 = vand.u32 %v231, 4294901760
    %v917 = vsub.f32 %v231, %v916
    %v918 = vand.u32 %v917, 4294901760
    %v919 = vsub.f32 %v917, %v918
    %v920 = vand.u32 %v919, 4294901760
    %921 = vmatpush1.xpose.msra.mxu0 %v920
    %922 = vmatprep.subr.mxu0 0.0
    %v923 = vand.u32 %v230, 4294901760
    %v924 = vsub.f32 %v230, %v923
    %v925 = vand.u32 %v924, 4294901760
    %v926 = vsub.f32 %v924, %v925
    %v927 = vand.u32 %v926, 4294901760
    %928 = vmatpush1.xpose.msra.mxu0 %v927
    %929 = vmatprep.subr.mxu0 0.0
    %v930 = vand.u32 %v229, 4294901760
    %v931 = vsub.f32 %v229, %v930
    %v932 = vand.u32 %v931, 4294901760
    %v933 = vsub.f32 %v931, %v932
    %v934 = vand.u32 %v933, 4294901760
    %935 = vmatpush1.xpose.msra.mxu0 %v934
    %936 = vmatprep.subr.mxu0 0.0
    %937 = vmatpush2.xpose.msra.mxu0 0.0
    %938 = vmatprep.subr.mxu0 0.0
    %939 = vmatpush2.xpose.msra.mxu0 0.0
    %940 = vmatprep.subr.mxu0 0.0
    %941 = vmatpush2.xpose.msra.mxu0 0.0
    %942 = vmatprep.subr.mxu0 0.0
    %943 = vmatpush2.xpose.msra.mxu0 0.0
    %944 = vmatprep.subr.mxu0 0.0
    %945 = vmatpush2.xpose.msra.mxu0 0.0
    %946 = vmatprep.subr.mxu0 0.0
    %947 = vmatpush2.xpose.msra.mxu0 0.0
    %948 = vmatprep.subr.mxu0 0.0
    %949 = vmatpush2.xpose.msra.mxu0 0.0
    %950 = vmatprep.subr.mxu0 0.0
    %951 = vmatpush2.xpose.msra.mxu0 0.0
    %952 = vmatprep.subr.mxu0 0.0
    %953 = vmatpush2.xpose.msra.mxu0 0.0
    %954 = vmatprep.subr.mxu0 0.0
    %955 = vmatpush2.xpose.msra.mxu0 0.0
    %956 = vmatprep.subr.mxu0 0.0
    %957 = vmatpush2.xpose.msra.mxu0 0.0
    %958 = vmatprep.subr.mxu0 0.0
    %959 = vmatpush2.xpose.msra.mxu0 0.0
    %960 = vmatprep.subr.mxu0 0.0
    %961 = vmatpush2.xpose.msra.mxu0 0.0
    %962 = vmatprep.subr.mxu0 0.0
    %963 = vmatpush2.xpose.msra.mxu0 0.0
    %964 = vmatprep.subr.mxu0 0.0
    %965 = vmatpush2.xpose.msra.mxu0 0.0
    %966 = vmatprep.subr.mxu0 0.0
    %967 = vmatpush2.xpose.msra.mxu0 0.0
    %968 = vmatprep.mubr.f32.mxu0 0.0
    %v969 = vand.u32 %v233, 4294901760
    %970 = vmatmul.mubr.f32.gmra.mxu0 %v969
    %v971 = vpop.f32.mrf.mxu0
    %v972 = vadd.f32 %v871, %v971
    %v973 = vpop.f32.mrf.mxu0
    %974 = vmatprep.mubr.f32.mxu0 0.0
    %v975 = vand.u32 %v234, 4294901760
    %976 = vmatmul.mubr.f32.gmra.mxu0 %v975
    %v977 = vpop.f32.mrf.mxu0
    %v978 = vadd.f32 %v881, %v977
    %v979 = vpop.f32.mrf.mxu0
    %980 = vdwg.mxu0
    %981 = vmatprep.subr.mxu0 0.0
    %982 = vmatpush1.xpose.msra.mxu0 0.0
    %983 = vmatprep.subr.mxu0 0.0
    %984 = vmatpush1.xpose.msra.mxu0 0.0
    %985 = vmatprep.subr.mxu0 0.0
    %986 = vmatpush1.xpose.msra.mxu0 0.0
    %987 = vmatprep.subr.mxu0 0.0
    %988 = vmatpush1.xpose.msra.mxu0 0.0
    %989 = vmatprep.subr.mxu0 0.0
    %990 = vmatpush1.xpose.msra.mxu0 0.0
    %991 = vmatprep.subr.mxu0 0.0
    %992 = vmatpush1.xpose.msra.mxu0 0.0
    %993 = vmatprep.subr.mxu0 0.0
    %994 = vmatpush1.xpose.msra.mxu0 0.0
    %995 = vmatprep.subr.mxu0 0.0
    %996 = vmatpush1.xpose.msra.mxu0 0.0
    %997 = vmatprep.subr.mxu0 0.0
    %998 = vmatpush1.xpose.msra.mxu0 0.0
    %999 = vmatprep.subr.mxu0 0.0
    %1000 = vmatpush1.xpose.msra.mxu0 0.0
    %1001 = vmatprep.subr.mxu0 0.0
    %1002 = vmatpush1.xpose.msra.mxu0 0.0
    %1003 = vmatprep.subr.mxu0 0.0
    %1004 = vmatpush1.xpose.msra.mxu0 0.0
    %1005 = vmatprep.subr.mxu0 0.0
    %v1006 = vand.u32 %v232, 4294901760
    %v1007 = vsub.f32 %v232, %v1006
    %1008 = vmatpush1.xpose.msra.mxu0 %v1007
    %1009 = vmatprep.subr.mxu0 0.0
    %v1010 = vand.u32 %v231, 4294901760
    %v1011 = vsub.f32 %v231, %v1010
    %1012 = vmatpush1.xpose.msra.mxu0 %v1011
    %1013 = vmatprep.subr.mxu0 0.0
    %v1014 = vand.u32 %v230, 4294901760
    %v1015 = vsub.f32 %v230, %v1014
    %1016 = vmatpush1.xpose.msra.mxu0 %v1015
    %1017 = vmatprep.subr.mxu0 0.0
    %v1018 = vand.u32 %v229, 4294901760
    %v1019 = vsub.f32 %v229, %v1018
    %1020 = vmatpush1.xpose.msra.mxu0 %v1019
    %1021 = vmatprep.subr.mxu0 0.0
    %1022 = vmatpush2.xpose.msra.mxu0 0.0
    %1023 = vmatprep.subr.mxu0 0.0
    %1024 = vmatpush2.xpose.msra.mxu0 0.0
    %1025 = vmatprep.subr.mxu0 0.0
    %1026 = vmatpush2.xpose.msra.mxu0 0.0
    %1027 = vmatprep.subr.mxu0 0.0
    %1028 = vmatpush2.xpose.msra.mxu0 0.0
    %1029 = vmatprep.subr.mxu0 0.0
    %1030 = vmatpush2.xpose.msra.mxu0 0.0
    %1031 = vmatprep.subr.mxu0 0.0
    %1032 = vmatpush2.xpose.msra.mxu0 0.0
    %1033 = vmatprep.subr.mxu0 0.0
    %1034 = vmatpush2.xpose.msra.mxu0 0.0
    %1035 = vmatprep.subr.mxu0 0.0
    %1036 = vmatpush2.xpose.msra.mxu0 0.0
    %1037 = vmatprep.subr.mxu0 0.0
    %1038 = vmatpush2.xpose.msra.mxu0 0.0
    %1039 = vmatprep.subr.mxu0 0.0
    %1040 = vmatpush2.xpose.msra.mxu0 0.0
    %1041 = vmatprep.subr.mxu0 0.0
    %1042 = vmatpush2.xpose.msra.mxu0 0.0
    %1043 = vmatprep.subr.mxu0 0.0
    %1044 = vmatpush2.xpose.msra.mxu0 0.0
    %1045 = vmatprep.subr.mxu0 0.0
    %1046 = vmatpush2.xpose.msra.mxu0 0.0
    %1047 = vmatprep.subr.mxu0 0.0
    %1048 = vmatpush2.xpose.msra.mxu0 0.0
    %1049 = vmatprep.subr.mxu0 0.0
    %1050 = vmatpush2.xpose.msra.mxu0 0.0
    %1051 = vmatprep.subr.mxu0 0.0
    %1052 = vmatpush2.xpose.msra.mxu0 0.0
    %1053 = vmatprep.mubr.f32.mxu0 0.0
    %v1054 = vand.u32 %v233, 4294901760
    %v1055 = vsub.f32 %v233, %v1054
    %1056 = vmatmul.mubr.f32.gmra.mxu0 %v1055
    %v1057 = vpop.f32.mrf.mxu0
    %v1058 = vadd.f32 %v972, %v1057
    %v1059 = vpop.f32.mrf.mxu0
    %1060 = vmatprep.mubr.f32.mxu0 0.0
    %v1061 = vand.u32 %v234, 4294901760
    %v1062 = vsub.f32 %v234, %v1061
    %1063 = vmatmul.mubr.f32.gmra.mxu0 %v1062
    %v1064 = vpop.f32.mrf.mxu0
    %v1065 = vadd.f32 %v978, %v1064
    %v1066 = vpop.f32.mrf.mxu0
    %1067 = vdwg.mxu0
    %1068 = vmatprep.subr.mxu0 0.0
    %1069 = vmatpush1.xpose.msra.mxu0 0.0
    %1070 = vmatprep.subr.mxu0 0.0
    %1071 = vmatpush1.xpose.msra.mxu0 0.0
    %1072 = vmatprep.subr.mxu0 0.0
    %1073 = vmatpush1.xpose.msra.mxu0 0.0
    %1074 = vmatprep.subr.mxu0 0.0
    %1075 = vmatpush1.xpose.msra.mxu0 0.0
    %1076 = vmatprep.subr.mxu0 0.0
    %1077 = vmatpush1.xpose.msra.mxu0 0.0
    %1078 = vmatprep.subr.mxu0 0.0
    %1079 = vmatpush1.xpose.msra.mxu0 0.0
    %1080 = vmatprep.subr.mxu0 0.0
    %1081 = vmatpush1.xpose.msra.mxu0 0.0
    %1082 = vmatprep.subr.mxu0 0.0
    %1083 = vmatpush1.xpose.msra.mxu0 0.0
    %1084 = vmatprep.subr.mxu0 0.0
    %1085 = vmatpush1.xpose.msra.mxu0 0.0
    %1086 = vmatprep.subr.mxu0 0.0
    %1087 = vmatpush1.xpose.msra.mxu0 0.0
    %1088 = vmatprep.subr.mxu0 0.0
    %1089 = vmatpush1.xpose.msra.mxu0 0.0
    %1090 = vmatprep.subr.mxu0 0.0
    %1091 = vmatpush1.xpose.msra.mxu0 0.0
    %1092 = vmatprep.subr.mxu0 0.0
    %v1093 = vand.u32 %v232, 4294901760
    %1094 = vmatpush1.xpose.msra.mxu0 %v1093
    %1095 = vmatprep.subr.mxu0 0.0
    %v1096 = vand.u32 %v231, 4294901760
    %1097 = vmatpush1.xpose.msra.mxu0 %v1096
    %1098 = vmatprep.subr.mxu0 0.0
    %v1099 = vand.u32 %v230, 4294901760
    %1100 = vmatpush1.xpose.msra.mxu0 %v1099
    %1101 = vmatprep.subr.mxu0 0.0
    %v1102 = vand.u32 %v229, 4294901760
    %1103 = vmatpush1.xpose.msra.mxu0 %v1102
    %1104 = vmatprep.subr.mxu0 0.0
    %1105 = vmatpush2.xpose.msra.mxu0 0.0
    %1106 = vmatprep.subr.mxu0 0.0
    %1107 = vmatpush2.xpose.msra.mxu0 0.0
    %1108 = vmatprep.subr.mxu0 0.0
    %1109 = vmatpush2.xpose.msra.mxu0 0.0
    %1110 = vmatprep.subr.mxu0 0.0
    %1111 = vmatpush2.xpose.msra.mxu0 0.0
    %1112 = vmatprep.subr.mxu0 0.0
    %1113 = vmatpush2.xpose.msra.mxu0 0.0
    %1114 = vmatprep.subr.mxu0 0.0
    %1115 = vmatpush2.xpose.msra.mxu0 0.0
    %1116 = vmatprep.subr.mxu0 0.0
    %1117 = vmatpush2.xpose.msra.mxu0 0.0
    %1118 = vmatprep.subr.mxu0 0.0
    %1119 = vmatpush2.xpose.msra.mxu0 0.0
    %1120 = vmatprep.subr.mxu0 0.0
    %1121 = vmatpush2.xpose.msra.mxu0 0.0
    %1122 = vmatprep.subr.mxu0 0.0
    %1123 = vmatpush2.xpose.msra.mxu0 0.0
    %1124 = vmatprep.subr.mxu0 0.0
    %1125 = vmatpush2.xpose.msra.mxu0 0.0
    %1126 = vmatprep.subr.mxu0 0.0
    %1127 = vmatpush2.xpose.msra.mxu0 0.0
    %1128 = vmatprep.subr.mxu0 0.0
    %1129 = vmatpush2.xpose.msra.mxu0 0.0
    %1130 = vmatprep.subr.mxu0 0.0
    %1131 = vmatpush2.xpose.msra.mxu0 0.0
    %1132 = vmatprep.subr.mxu0 0.0
    %1133 = vmatpush2.xpose.msra.mxu0 0.0
    %1134 = vmatprep.subr.mxu0 0.0
    %1135 = vmatpush2.xpose.msra.mxu0 0.0
    %1136 = vmatprep.mubr.f32.mxu0 0.0
    %v1137 = vand.u32 %v233, 4294901760
    %v1138 = vsub.f32 %v233, %v1137
    %v1139 = vand.u32 %v1138, 4294901760
    %1140 = vmatmul.mubr.f32.gmra.mxu0 %v1139
    %v1141 = vpop.f32.mrf.mxu0
    %v1142 = vadd.f32 %v1058, %v1141
    %v1143 = vpop.f32.mrf.mxu0
    %1144 = vmatprep.mubr.f32.mxu0 0.0
    %v1145 = vand.u32 %v234, 4294901760
    %v1146 = vsub.f32 %v234, %v1145
    %v1147 = vand.u32 %v1146, 4294901760
    %1148 = vmatmul.mubr.f32.gmra.mxu0 %v1147
    %v1149 = vpop.f32.mrf.mxu0
    %v1150 = vadd.f32 %v1065, %v1149
    %v1151 = vpop.f32.mrf.mxu0
    %1152 = vdwg.mxu0
    %1153 = vmatprep.subr.mxu0 0.0
    %1154 = vmatpush1.xpose.msra.mxu0 0.0
    %1155 = vmatprep.subr.mxu0 0.0
    %1156 = vmatpush1.xpose.msra.mxu0 0.0
    %1157 = vmatprep.subr.mxu0 0.0
    %1158 = vmatpush1.xpose.msra.mxu0 0.0
    %1159 = vmatprep.subr.mxu0 0.0
    %1160 = vmatpush1.xpose.msra.mxu0 0.0
    %1161 = vmatprep.subr.mxu0 0.0
    %1162 = vmatpush1.xpose.msra.mxu0 0.0
    %1163 = vmatprep.subr.mxu0 0.0
    %1164 = vmatpush1.xpose.msra.mxu0 0.0
    %1165 = vmatprep.subr.mxu0 0.0
    %1166 = vmatpush1.xpose.msra.mxu0 0.0
    %1167 = vmatprep.subr.mxu0 0.0
    %1168 = vmatpush1.xpose.msra.mxu0 0.0
    %1169 = vmatprep.subr.mxu0 0.0
    %1170 = vmatpush1.xpose.msra.mxu0 0.0
    %1171 = vmatprep.subr.mxu0 0.0
    %1172 = vmatpush1.xpose.msra.mxu0 0.0
    %1173 = vmatprep.subr.mxu0 0.0
    %1174 = vmatpush1.xpose.msra.mxu0 0.0
    %1175 = vmatprep.subr.mxu0 0.0
    %1176 = vmatpush1.xpose.msra.mxu0 0.0
    %1177 = vmatprep.subr.mxu0 0.0
    %v1178 = vand.u32 %v232, 4294901760
    %v1179 = vsub.f32 %v232, %v1178
    %v1180 = vand.u32 %v1179, 4294901760
    %1181 = vmatpush1.xpose.msra.mxu0 %v1180
    %1182 = vmatprep.subr.mxu0 0.0
    %v1183 = vand.u32 %v231, 4294901760
    %v1184 = vsub.f32 %v231, %v1183
    %v1185 = vand.u32 %v1184, 4294901760
    %1186 = vmatpush1.xpose.msra.mxu0 %v1185
    %1187 = vmatprep.subr.mxu0 0.0
    %v1188 = vand.u32 %v230, 4294901760
    %v1189 = vsub.f32 %v230, %v1188
    %v1190 = vand.u32 %v1189, 4294901760
    %1191 = vmatpush1.xpose.msra.mxu0 %v1190
    %1192 = vmatprep.subr.mxu0 0.0
    %v1193 = vand.u32 %v229, 4294901760
    %v1194 = vsub.f32 %v229, %v1193
    %v1195 = vand.u32 %v1194, 4294901760
    %1196 = vmatpush1.xpose.msra.mxu0 %v1195
    %1197 = vmatprep.subr.mxu0 0.0
    %1198 = vmatpush2.xpose.msra.mxu0 0.0
    %1199 = vmatprep.subr.mxu0 0.0
    %1200 = vmatpush2.xpose.msra.mxu0 0.0
    %1201 = vmatprep.subr.mxu0 0.0
    %1202 = vmatpush2.xpose.msra.mxu0 0.0
    %1203 = vmatprep.subr.mxu0 0.0
    %1204 = vmatpush2.xpose.msra.mxu0 0.0
    %1205 = vmatprep.subr.mxu0 0.0
    %1206 = vmatpush2.xpose.msra.mxu0 0.0
    %1207 = vmatprep.subr.mxu0 0.0
    %1208 = vmatpush2.xpose.msra.mxu0 0.0
    %1209 = vmatprep.subr.mxu0 0.0
    %1210 = vmatpush2.xpose.msra.mxu0 0.0
    %1211 = vmatprep.subr.mxu0 0.0
    %1212 = vmatpush2.xpose.msra.mxu0 0.0
    %1213 = vmatprep.subr.mxu0 0.0
    %1214 = vmatpush2.xpose.msra.mxu0 0.0
    %1215 = vmatprep.subr.mxu0 0.0
    %1216 = vmatpush2.xpose.msra.mxu0 0.0
    %1217 = vmatprep.subr.mxu0 0.0
    %1218 = vmatpush2.xpose.msra.mxu0 0.0
    %1219 = vmatprep.subr.mxu0 0.0
    %1220 = vmatpush2.xpose.msra.mxu0 0.0
    %1221 = vmatprep.subr.mxu0 0.0
    %1222 = vmatpush2.xpose.msra.mxu0 0.0
    %1223 = vmatprep.subr.mxu0 0.0
    %1224 = vmatpush2.xpose.msra.mxu0 0.0
    %1225 = vmatprep.subr.mxu0 0.0
    %1226 = vmatpush2.xpose.msra.mxu0 0.0
    %1227 = vmatprep.subr.mxu0 0.0
    %1228 = vmatpush2.xpose.msra.mxu0 0.0
    %1229 = vmatprep.mubr.f32.mxu0 0.0
    %v1230 = vand.u32 %v233, 4294901760
    %1231 = vmatmul.mubr.f32.gmra.mxu0 %v1230
    %v1232 = vpop.f32.mrf.mxu0
    %v1233 = vadd.f32 %v1142, %v1232
    %v1234 = vpop.f32.mrf.mxu0
    %1235 = vmatprep.mubr.f32.mxu0 0.0
    %v1236 = vand.u32 %v234, 4294901760
    %1237 = vmatmul.mubr.f32.gmra.mxu0 %v1236
    %v1238 = vpop.f32.mrf.mxu0
    %v1239 = vadd.f32 %v1150, %v1238
    %v1240 = vpop.f32.mrf.mxu0
    %1241 = vdwg.mxu0
    %1242 = vmatprep.subr.mxu0 0.0
    %1243 = vmatpush1.xpose.msra.mxu0 0.0
    %1244 = vmatprep.subr.mxu0 0.0
    %1245 = vmatpush1.xpose.msra.mxu0 0.0
    %1246 = vmatprep.subr.mxu0 0.0
    %1247 = vmatpush1.xpose.msra.mxu0 0.0
    %1248 = vmatprep.subr.mxu0 0.0
    %1249 = vmatpush1.xpose.msra.mxu0 0.0
    %1250 = vmatprep.subr.mxu0 0.0
    %1251 = vmatpush1.xpose.msra.mxu0 0.0
    %1252 = vmatprep.subr.mxu0 0.0
    %1253 = vmatpush1.xpose.msra.mxu0 0.0
    %1254 = vmatprep.subr.mxu0 0.0
    %1255 = vmatpush1.xpose.msra.mxu0 0.0
    %1256 = vmatprep.subr.mxu0 0.0
    %1257 = vmatpush1.xpose.msra.mxu0 0.0
    %1258 = vmatprep.subr.mxu0 0.0
    %1259 = vmatpush1.xpose.msra.mxu0 0.0
    %1260 = vmatprep.subr.mxu0 0.0
    %1261 = vmatpush1.xpose.msra.mxu0 0.0
    %1262 = vmatprep.subr.mxu0 0.0
    %1263 = vmatpush1.xpose.msra.mxu0 0.0
    %1264 = vmatprep.subr.mxu0 0.0
    %1265 = vmatpush1.xpose.msra.mxu0 0.0
    %1266 = vmatprep.subr.mxu0 0.0
    %v1267 = vand.u32 %v232, 4294901760
    %1268 = vmatpush1.xpose.msra.mxu0 %v1267
    %1269 = vmatprep.subr.mxu0 0.0
    %v1270 = vand.u32 %v231, 4294901760
    %1271 = vmatpush1.xpose.msra.mxu0 %v1270
    %1272 = vmatprep.subr.mxu0 0.0
    %v1273 = vand.u32 %v230, 4294901760
    %1274 = vmatpush1.xpose.msra.mxu0 %v1273
    %1275 = vmatprep.subr.mxu0 0.0
    %v1276 = vand.u32 %v229, 4294901760
    %1277 = vmatpush1.xpose.msra.mxu0 %v1276
    %1278 = vmatprep.subr.mxu0 0.0
    %1279 = vmatpush2.xpose.msra.mxu0 0.0
    %1280 = vmatprep.subr.mxu0 0.0
    %1281 = vmatpush2.xpose.msra.mxu0 0.0
    %1282 = vmatprep.subr.mxu0 0.0
    %1283 = vmatpush2.xpose.msra.mxu0 0.0
    %1284 = vmatprep.subr.mxu0 0.0
    %1285 = vmatpush2.xpose.msra.mxu0 0.0
    %1286 = vmatprep.subr.mxu0 0.0
    %1287 = vmatpush2.xpose.msra.mxu0 0.0
    %1288 = vmatprep.subr.mxu0 0.0
    %1289 = vmatpush2.xpose.msra.mxu0 0.0
    %1290 = vmatprep.subr.mxu0 0.0
    %1291 = vmatpush2.xpose.msra.mxu0 0.0
    %1292 = vmatprep.subr.mxu0 0.0
    %1293 = vmatpush2.xpose.msra.mxu0 0.0
    %1294 = vmatprep.subr.mxu0 0.0
    %1295 = vmatpush2.xpose.msra.mxu0 0.0
    %1296 = vmatprep.subr.mxu0 0.0
    %1297 = vmatpush2.xpose.msra.mxu0 0.0
    %1298 = vmatprep.subr.mxu0 0.0
    %1299 = vmatpush2.xpose.msra.mxu0 0.0
    %1300 = vmatprep.subr.mxu0 0.0
    %1301 = vmatpush2.xpose.msra.mxu0 0.0
    %1302 = vmatprep.subr.mxu0 0.0
    %1303 = vmatpush2.xpose.msra.mxu0 0.0
    %1304 = vmatprep.subr.mxu0 0.0
    %1305 = vmatpush2.xpose.msra.mxu0 0.0
    %1306 = vmatprep.subr.mxu0 0.0
    %1307 = vmatpush2.xpose.msra.mxu0 0.0
    %1308 = vmatprep.subr.mxu0 0.0
    %1309 = vmatpush2.xpose.msra.mxu0 0.0
    %1310 = vmatprep.mubr.f32.mxu0 0.0
    %v1311 = vand.u32 %v233, 4294901760
    %1312 = vmatmul.mubr.f32.gmra.mxu0 %v1311
    %v1313 = vpop.f32.mrf.mxu0
    %v1314 = vadd.f32 %v1233, %v1313
    %v1315 = vpop.f32.mrf.mxu0
    %1316 = vmatprep.mubr.f32.mxu0 0.0
    %v1317 = vand.u32 %v234, 4294901760
    %1318 = vmatmul.mubr.f32.gmra.mxu0 %v1317
    %v1319 = vpop.f32.mrf.mxu0
    %v1320 = vadd.f32 %v1239, %v1319
    %v1321 = vpop.f32.mrf.mxu0
    %1322 = vdwg.mxu0
    %v1323 = vmax.f32 %v1314, 1e-10
    %v1324 = vmax.f32 %v1320, 1e-10
    %v1325 = vlog2.pop %v1323
    %v1326 = vmul.f32 %v1325, 0.6931472
    %v1327 = vlog2.pop %v1324
    %v1328 = vmul.f32 %v1327, 0.6931472
    %v1329 = vmul.f32 %v1326, 0.4342945
    %v1330 = vmul.f32 %v1328, 0.4342945
    %v1331 = vsel %vm771, %v1329, -inf
    %v1332 = vsel %vm771, %v1330, -inf
    %v1333 = vmax.f32 %v1331, %v1332
    %1334 = vmax.xlane.f32.xlu0 %v1333
    %v1335 = vpop.xlane.xlu0 %1334
    %v1336 = vrot.slane %v1335, 4
    %v1337 = vmax.f32 %v1335, %v1336
    %v1338 = vrot.slane %v1337, 2
    %v1339 = vmax.f32 %v1337, %v1338
    %v1340 = vrot.slane %v1339, 1
    %v1341 = vmax.f32 %v1339, %v1340
    %s1342 = vtos %v1341
    %s1343 = ssub.f32 %s1342, 8.0
    %v1344 = vstv %s1343
    %v1345 = vmax.f32 %v1329, %v1344
    %v1346 = vmax.f32 %v1330, %v1344
    %v1347 = vadd.f32 %v1345, 4.0
    %v1348 = vadd.f32 %v1346, 4.0
    %v1349 = vmul.f32 %v1347, %v790
    %v1350 = vmul.f32 %v1348, %v790
    %s1351 = scalar_lea.vmem [#allocation8], 16
    %1352 = vst.msk [vmem:[%s1351] sm:$0xff] %vm771, %v1349
    %1353 = vst.msk [vmem:[%s1351 + $0x8] sm:$0xff] %vm771, %v1350
    // Predicated region
    $region26: #{tpu_custom_call.1} parent=1 // pred_check
      _
    $region27: #{tpu_custom_call.1} parent=1 // pred_check_branch
      %1355 = sbr.rel (0) target = $region29
    $region28: #{tpu_custom_call.1} parent=1 // pred_region
      %s1357 = ssub.s32 512, 512
      %1358 = vsyncadd [#allocation4], %s1357
      %s1359 = sshll.u32 [#allocation8], 4
      %s1360 = int_to_ptr.vmem [resolvable:$true] %s1359
      %1365 = dma.vmem_to_hbm [thread:$0]  %s1360, 512, %s3, [#allocation4], 128, 128, 8
    $region29: #{tpu_custom_call.1} parent=1 // pred_fallthru
      _
    // Predicated region
    $region30: #{tpu_custom_call.1} parent=1 // pred_check
      _
    $region31: #{tpu_custom_call.1} parent=1 // pred_check_branch
      %1367 = sbr.rel (0) target = $region33
    $region32: #{tpu_custom_call.1} parent=1 // pred_region
      %1368 = dma.done [#allocation4], 512
    $region33: #{tpu_custom_call.1} parent=1 // pred_fallthru
      _
    %1369 = vsyncpa [#allocation3], 1
    %1370 = vsyncpa [#allocation6], 1
    %1371 = vsyncpa [#allocation4], 1

</llo_original>
